<compile_context>
chip_gen: v5e
topology: v5e:2x2
jax: 0.10.0
libtpu: 0.0.40
codegen_flags: <defaults>
</compile_context>

<pallas_src>
import functools
import math

import jax
import jax.numpy as jnp
from jax.experimental import pallas as pl
from jax.experimental.pallas import tpu as pltpu


def _round_up(x, m):
    return (x + m - 1) // m * m


# `pl.Squeezed()` drops the size-1 batch dim inside the kernel; fall back to
# None (same semantics) on older jax versions.
_SQUEEZED = pl.Squeezed() if hasattr(pl, "Squeezed") else None


# ---------------------------------------------------------------------------
# Pass 1: fused LayerNorm + QKV projection over row tiles of (B*S_pad, Din_pad)
# ---------------------------------------------------------------------------
def ln_qkv_kernel(x_ref, gamma_ref, beta_ref, wqkv_ref, q_ref, k_ref, v_ref,
                  *, d_real: int, dq_pad: int, eps: float):
    x = x_ref[...]                                    # (TM, Din_pad), input dtype
    xf = x.astype(jnp.float32)

    # LayerNorm over the *real* feature columns only (padded columns are zero,
    # so the sum is exact; the variance uses a masked centered sum).
    col = jax.lax.broadcasted_iota(jnp.int32, xf.shape, 1)
    feat_mask = col < d_real
    inv_d = jnp.float32(1.0 / d_real)
    mean = jnp.sum(xf, axis=-1, keepdims=True) * inv_d
    diff = jnp.where(feat_mask, xf - mean, 0.0)
    var = jnp.sum(diff * diff, axis=-1, keepdims=True) * inv_d
    xn = diff * jax.lax.rsqrt(var + eps)
    xn = xn * gamma_ref[...].astype(jnp.float32) + beta_ref[...].astype(jnp.float32)
    xn = xn.astype(x.dtype)                           # fp16-safe LN: cast back

    # One wide-N MXU matmul against the fused [Wq*scale | Wk | Wv] weight.
    qkv = jnp.dot(xn, wqkv_ref[...], preferred_element_type=jnp.float32)

    # Column boundaries are multiples of 128 -> cheap, lane-aligned slices.
    q_ref[...] = qkv[:, :dq_pad].astype(q_ref.dtype)
    k_ref[...] = qkv[:, dq_pad:2 * dq_pad].astype(k_ref.dtype)
    v_ref[...] = qkv[:, 2 * dq_pad:].astype(v_ref.dtype)


# ---------------------------------------------------------------------------
# Pass 2: flash-style attention with online softmax over KV tiles
# ---------------------------------------------------------------------------
def flash_attn_kernel(q_ref, k_ref, v_ref, o_ref, m_sc, l_sc, acc_sc,
                      *, s_real: int, block_kv: int):
    ki = pl.program_id(2)

    @pl.when(ki == 0)
    def _init():
        m_sc[...] = jnp.full_like(m_sc, -jnp.inf)
        l_sc[...] = jnp.zeros_like(l_sc)
        acc_sc[...] = jnp.zeros_like(acc_sc)

    q = q_ref[...]                                    # (TQ,  Dh_pad)
    k = k_ref[...]                                    # (TKV, Dh_pad)
    # q @ k^T without an explicit transpose (contract the head dim of both).
    s = jax.lax.dot_general(q, k, (((1,), (1,)), ((), ())),
                            preferred_element_type=jnp.float32)   # (TQ, TKV)

    # Mask padded key positions (scale already folded into Wq).
    kv_pos = ki * block_kv + jax.lax.broadcasted_iota(jnp.int32, s.shape, 1)
    s = jnp.where(kv_pos < s_real, s, jnp.float32(-1e30))

    m_prev = m_sc[...]
    m_new = jnp.maximum(m_prev, jnp.max(s, axis=-1, keepdims=True))
    alpha = jnp.exp(m_prev - m_new)
    p = jnp.exp(s - m_new)
    l_sc[...] = alpha * l_sc[...] + jnp.sum(p, axis=-1, keepdims=True)
    acc_sc[...] = alpha * acc_sc[...] + jnp.dot(
        p.astype(v_ref.dtype), v_ref[...], preferred_element_type=jnp.float32)
    m_sc[...] = m_new

    @pl.when(ki == pl.num_programs(2) - 1)
    def _finish():
        o_ref[...] = (acc_sc[...] *
                      pl.reciprocal(l_sc[...], approx=True)).astype(o_ref.dtype)


# ---------------------------------------------------------------------------
# Wrapper: pads to lane-dense shapes, fuses weights, runs the two passes.
# ---------------------------------------------------------------------------
def mh_attention(x, gamma, beta, wq, wk, wv, *, out_dim, eps=1e-5,
                 block_rows=128, block_q=128, block_kv=128):
    B, S, Din = x.shape
    dq = out_dim // 4
    dtype = x.dtype

    # Lane-dense padded sizes (multiples of 128 on every feature axis).
    din_p = _round_up(Din, 128)
    dq_p = _round_up(dq, 128)
    dv_p = _round_up(out_dim, 128)
    s_p = _round_up(S, max(block_q, block_kv))

    # Fold the module's 1/sqrt(out_dim) scale into Wq (wrapper-side, exact-ish).
    scale = 1.0 / math.sqrt(out_dim)

    def pad2(w, r, c):
        return jnp.zeros((r, c), dtype).at[:w.shape[0], :w.shape[1]].set(
            w.astype(dtype))

    wqkv = jnp.concatenate([pad2(wq * scale, din_p, dq_p),
                            pad2(wk, din_p, dq_p),
                            pad2(wv, din_p, dv_p)], axis=1)
    gamma_p = jnp.zeros((1, din_p), dtype).at[0, :Din].set(gamma.astype(dtype))
    beta_p = jnp.zeros((1, din_p), dtype).at[0, :Din].set(beta.astype(dtype))

    x_p = jnp.zeros((B, s_p, din_p), dtype).at[:, :S, :Din].set(x)
    x2d = x_p.reshape(B * s_p, din_p)

    rows = B * s_p
    assert rows % block_rows == 0          # holds: s_p is a multiple of 128

    # -------- pass 1: LayerNorm + fused QKV projection ----------------------
    k1 = functools.partial(ln_qkv_kernel, d_real=Din, dq_pad=dq_p, eps=eps)
    q2d, k2d, v2d = pl.pallas_call(
        k1,
        out_shape=(jax.ShapeDtypeStruct((rows, dq_p), dtype),
                   jax.ShapeDtypeStruct((rows, dq_p), dtype),
                   jax.ShapeDtypeStruct((rows, dv_p), dtype)),
        grid_spec=pltpu.PrefetchScalarGridSpec(
            num_scalar_prefetch=0,
            grid=(rows // block_rows,),
            in_specs=[
                pl.BlockSpec((block_rows, din_p), lambda i: (i, 0)),        # x
                pl.BlockSpec((1, din_p), lambda i: (0, 0)),                 # gamma
                pl.BlockSpec((1, din_p), lambda i: (0, 0)),                 # beta
                pl.BlockSpec((din_p, 2 * dq_p + dv_p), lambda i: (0, 0)),   # Wqkv
            ],
            out_specs=[
                pl.BlockSpec((block_rows, dq_p), lambda i: (i, 0)),
                pl.BlockSpec((block_rows, dq_p), lambda i: (i, 0)),
                pl.BlockSpec((block_rows, dv_p), lambda i: (i, 0)),
            ]),
        compiler_params=pltpu.CompilerParams(
            dimension_semantics=("parallel",)),
    )(x2d, gamma_p, beta_p, wqkv)

    q = q2d.reshape(B, s_p, dq_p)
    k = k2d.reshape(B, s_p, dq_p)
    v = v2d.reshape(B, s_p, dv_p)

    # -------- pass 2: flash attention ---------------------------------------
    k2 = functools.partial(flash_attn_kernel, s_real=S, block_kv=block_kv)
    out_p = pl.pallas_call(
        k2,
        out_shape=jax.ShapeDtypeStruct((B, s_p, dv_p), dtype),
        grid_spec=pltpu.PrefetchScalarGridSpec(
            num_scalar_prefetch=0,
            grid=(B, s_p // block_q, s_p // block_kv),
            in_specs=[
                pl.BlockSpec((_SQUEEZED, block_q, dq_p),
                             lambda b, qi, ki: (b, qi, 0)),                 # Q
                pl.BlockSpec((_SQUEEZED, block_kv, dq_p),
                             lambda b, qi, ki: (b, ki, 0)),                 # K
                pl.BlockSpec((_SQUEEZED, block_kv, dv_p),
                             lambda b, qi, ki: (b, ki, 0)),                 # V
            ],
            out_specs=pl.BlockSpec((_SQUEEZED, block_q, dv_p),
                                   lambda b, qi, ki: (b, qi, 0)),
            scratch_shapes=[
                pltpu.VMEM((block_q, 1), jnp.float32),      # running max
                pltpu.VMEM((block_q, 1), jnp.float32),      # running sum
                pltpu.VMEM((block_q, dv_p), jnp.float32),   # accumulator
            ]),
        compiler_params=pltpu.CompilerParams(
            dimension_semantics=("parallel", "parallel", "arbitrary")),
    )(q, k, v)

    return out_p[:, :S, :out_dim]


def mh_attention_ref(x, gamma, beta, wq, wk, wv, *, out_dim, eps=1e-5):
    """Pure-JAX reference reproducing the PyTorch forward."""
    xf = x.astype(jnp.float32)
    mean = xf.mean(-1, keepdims=True)
    var = ((xf - mean) ** 2).mean(-1, keepdims=True)
    xn = ((xf - mean) / jnp.sqrt(var + eps)) * gamma + beta
    xn = xn.astype(x.dtype)
    q = xn @ wq
    k = xn @ wk
    v = xn @ wv
    scores = jnp.einsum("bqd,bkd->bqk", q, k) / out_dim ** 0.5
    attn = jax.nn.softmax(scores, axis=-1)
    return jnp.einsum("bqk,bkd->bqd", attn, v)


if __name__ == "__main__":
    B, S = 2, 8
    in_dim, out_dim = 32, 32   # out_dim // 4 == 8

    key = jax.random.PRNGKey(0)
    kx, kq, kk, kv = jax.random.split(key, 4)

    x = jax.random.normal(kx, (B, S, in_dim), dtype=jnp.float32)

    # Deterministic parameter init (shapes as in nn.Linear / nn.LayerNorm).
    # Linear weights stored transposed: (in_dim, out_features).
    bound = 1.0 / math.sqrt(in_dim)
    wq = jax.random.uniform(kq, (in_dim, out_dim // 4), jnp.float32, -bound, bound)
    wk = jax.random.uniform(kk, (in_dim, out_dim // 4), jnp.float32, -bound, bound)
    wv = jax.random.uniform(kv, (in_dim, out_dim), jnp.float32, -bound, bound)
    gamma = jnp.ones((in_dim,), jnp.float32)
    beta = jnp.zeros((in_dim,), jnp.float32)

    fn = jax.jit(functools.partial(mh_attention, out_dim=out_dim))
    out = jax.block_until_ready(fn(x, gamma, beta, wq, wk, wv))

    ref = mh_attention_ref(x, gamma, beta, wq, wk, wv, out_dim=out_dim)
    assert out.shape == (B, S, out_dim)
    # Tolerance allows for the EUP approximate reciprocal in the softmax
    # normalization (relative error ~1e-4).
    assert jnp.allclose(out, ref, atol=5e-3, rtol=5e-3), "mismatch vs reference"

    print("KERNEL_OK")
</pallas_src>

<mosaic_0001>
module attributes {stable_mosaic.version = 11 : i64} {
  func.func @flash_attn_kernel(%arg0: i32, %arg1: i32, %arg2: i32, %arg3: memref<1x128x128xf32, #tpu.memory_space<vmem>>, %arg4: memref<1x128x128xf32, #tpu.memory_space<vmem>>, %arg5: memref<1x128x128xf32, #tpu.memory_space<vmem>>, %arg6: memref<1x128x128xf32, #tpu.memory_space<vmem>>, %arg7: memref<128x1xf32, #tpu.memory_space<vmem>>, %arg8: memref<128x1xf32, #tpu.memory_space<vmem>>, %arg9: memref<128x128xf32, #tpu.memory_space<vmem>>) attributes {dimension_semantics = [#tpu.dimension_semantics<parallel>, #tpu.dimension_semantics<parallel>, #tpu.dimension_semantics<arbitrary>], iteration_bounds = array<i64: 2, 1, 1>, scalar_prefetch = 0 : i64, scratch_operands = 3 : i64, tpu.core_type = #tpu.core_type<tc>, window_params = [{transform_indices = @transform_0, window_bounds = array<i64: 1, 128, 128>}, {transform_indices = @transform_1, window_bounds = array<i64: 1, 128, 128>}, {transform_indices = @transform_2, window_bounds = array<i64: 1, 128, 128>}, {transform_indices = @transform_3, window_bounds = array<i64: 1, 128, 128>}]} {
    %c0_i32 = arith.constant 0 : i32
    %0 = arith.cmpi eq, %arg2, %c0_i32 : i32
    %1 = arith.extui %0 : i1 to i32
    %c0_i32_0 = arith.constant 0 : i32
    %2 = arith.cmpi ne, %1, %c0_i32_0 : i32
    scf.if %2 {
      %cst_27 = arith.constant 0xFF800000 : f32
      %43 = vector.broadcast %cst_27 : f32 to vector<128x1xf32>
      %c0_28 = arith.constant 0 : index
      %c0_29 = arith.constant 0 : index
      %44 = vector.load %arg7[%c0_28, %c0_29] : memref<128x1xf32, #tpu.memory_space<vmem>>, vector<128x1xf32>
      tpu.vector_store %arg7[%c0_28, %c0_29], %43 {strides = array<i32>} : memref<128x1xf32, #tpu.memory_space<vmem>>, vector<128x1xf32>,
      %cst_30 = arith.constant 0.000000e+00 : f32
      %45 = vector.broadcast %cst_30 : f32 to vector<128x1xf32>
      %c0_31 = arith.constant 0 : index
      %c0_32 = arith.constant 0 : index
      %46 = vector.load %arg8[%c0_31, %c0_32] : memref<128x1xf32, #tpu.memory_space<vmem>>, vector<128x1xf32>
      tpu.vector_store %arg8[%c0_31, %c0_32], %45 {strides = array<i32>} : memref<128x1xf32, #tpu.memory_space<vmem>>, vector<128x1xf32>,
      %cst_33 = arith.constant 0.000000e+00 : f32
      %47 = vector.broadcast %cst_33 : f32 to vector<128x128xf32>
      %c0_34 = arith.constant 0 : index
      %c0_35 = arith.constant 0 : index
      %48 = vector.load %arg9[%c0_34, %c0_35] : memref<128x128xf32, #tpu.memory_space<vmem>>, vector<128x128xf32>
      tpu.vector_store %arg9[%c0_34, %c0_35], %47 {strides = array<i32>} : memref<128x128xf32, #tpu.memory_space<vmem>>, vector<128x128xf32>,
    } else {
    }
    %c0 = arith.constant 0 : index
    %c0_1 = arith.constant 0 : index
    %c0_2 = arith.constant 0 : index
    %3 = vector.load %arg3[%c0, %c0_1, %c0_2] : memref<1x128x128xf32, #tpu.memory_space<vmem>>, vector<1x128x128xf32>
    %4 = vector.shape_cast %3 : vector<1x128x128xf32> to vector<128x128xf32>
    %c0_3 = arith.constant 0 : index
    %c0_4 = arith.constant 0 : index
    %c0_5 = arith.constant 0 : index
    %5 = vector.load %arg4[%c0_3, %c0_4, %c0_5] : memref<1x128x128xf32, #tpu.memory_space<vmem>>, vector<1x128x128xf32>
    %6 = vector.shape_cast %5 : vector<1x128x128xf32> to vector<128x128xf32>
    %cst = arith.constant dense<0.000000e+00> : vector<128x128xf32>
    %7 = tpu.matmul %4, %6, %cst {dimension_numbers = #tpu.dot_dimension_numbers<[1], [1], [0], [0], [0, 0, 1, 0], [], []>} : vector<128x128xf32>, vector<128x128xf32>, vector<128x128xf32> -> vector<128x128xf32>
    %c128_i32 = arith.constant 128 : i32
    %8 = arith.muli %arg2, %c128_i32 : i32
    %9 = tpu.iota {dimensions = array<i32: 1>} : vector<128x128xi32>
    %10 = vector.broadcast %8 : i32 to vector<128x128xi32>
    %11 = arith.addi %10, %9 : vector<128x128xi32>
    %c8_i32 = arith.constant 8 : i32
    %12 = vector.broadcast %c8_i32 : i32 to vector<128x128xi32>
    %13 = arith.cmpi slt, %11, %12 : vector<128x128xi32>
    %cst_6 = arith.constant -1.000000e+30 : f32
    %14 = vector.broadcast %cst_6 : f32 to vector<128x128xf32>
    %15 = arith.select %13, %7, %14 : vector<128x128xi1>, vector<128x128xf32>
    %c0_7 = arith.constant 0 : index
    %c0_8 = arith.constant 0 : index
    %16 = vector.load %arg7[%c0_7, %c0_8] : memref<128x1xf32, #tpu.memory_space<vmem>>, vector<128x1xf32>
    %cst_9 = arith.constant dense<0xFF800000> : vector<128xf32>
    %17 = vector.multi_reduction <maximumf>, %15, %cst_9 [1] : vector<128x128xf32> to vector<128xf32>
    %18 = vector.shape_cast %17 : vector<128xf32> to vector<128x1xf32>
    %19 = arith.maximumf %16, %18 : vector<128x1xf32>
    %20 = arith.subf %16, %19 : vector<128x1xf32>
    %21 = math.exp %20 : vector<128x1xf32>
    %22 = vector.broadcast %19 : vector<128x1xf32> to vector<128x128xf32>
    %23 = arith.subf %15, %22 : vector<128x128xf32>
    %24 = math.exp %23 : vector<128x128xf32>
    %c0_10 = arith.constant 0 : index
    %c0_11 = arith.constant 0 : index
    %25 = vector.load %arg8[%c0_10, %c0_11] : memref<128x1xf32, #tpu.memory_space<vmem>>, vector<128x1xf32>
    %26 = arith.mulf %21, %25 : vector<128x1xf32>
    %cst_12 = arith.constant dense<0.000000e+00> : vector<128xf32>
    %27 = vector.multi_reduction <add>, %24, %cst_12 [1] : vector<128x128xf32> to vector<128xf32>
    %28 = vector.shape_cast %27 : vector<128xf32> to vector<128x1xf32>
    %29 = arith.addf %26, %28 : vector<128x1xf32>
    %c0_13 = arith.constant 0 : index
    %c0_14 = arith.constant 0 : index
    %30 = vector.load %arg8[%c0_13, %c0_14] : memref<128x1xf32, #tpu.memory_space<vmem>>, vector<128x1xf32>
    tpu.vector_store %arg8[%c0_13, %c0_14], %29 {strides = array<i32>} : memref<128x1xf32, #tpu.memory_space<vmem>>, vector<128x1xf32>,
    %c0_15 = arith.constant 0 : index
    %c0_16 = arith.constant 0 : index
    %31 = vector.load %arg9[%c0_15, %c0_16] : memref<128x128xf32, #tpu.memory_space<vmem>>, vector<128x128xf32>
    %32 = vector.broadcast %21 : vector<128x1xf32> to vector<128x128xf32>
    %33 = arith.mulf %32, %31 : vector<128x128xf32>
    %c0_17 = arith.constant 0 : index
    %c0_18 = arith.constant 0 : index
    %c0_19 = arith.constant 0 : index
    %34 = vector.load %arg5[%c0_17, %c0_18, %c0_19] : memref<1x128x128xf32, #tpu.memory_space<vmem>>, vector<1x128x128xf32>
    %35 = vector.shape_cast %34 : vector<1x128x128xf32> to vector<128x128xf32>
    %cst_20 = arith.constant dense<0.000000e+00> : vector<128x128xf32>
    %36 = tpu.matmul %24, %35, %cst_20 {dimension_numbers = #tpu.dot_dimension_numbers<[1], [0], [0], [1], [0, 0, 1, 1], [], []>} : vector<128x128xf32>, vector<128x128xf32>, vector<128x128xf32> -> vector<128x128xf32>
    %37 = arith.addf %33, %36 : vector<128x128xf32>
    %c0_21 = arith.constant 0 : index
    %c0_22 = arith.constant 0 : index
    %38 = vector.load %arg9[%c0_21, %c0_22] : memref<128x128xf32, #tpu.memory_space<vmem>>, vector<128x128xf32>
    tpu.vector_store %arg9[%c0_21, %c0_22], %37 {strides = array<i32>} : memref<128x128xf32, #tpu.memory_space<vmem>>, vector<128x128xf32>,
    %c0_23 = arith.constant 0 : index
    %c0_24 = arith.constant 0 : index
    %39 = vector.load %arg7[%c0_23, %c0_24] : memref<128x1xf32, #tpu.memory_space<vmem>>, vector<128x1xf32>
    tpu.vector_store %arg7[%c0_23, %c0_24], %19 {strides = array<i32>} : memref<128x1xf32, #tpu.memory_space<vmem>>, vector<128x1xf32>,
    %c0_i32_25 = arith.constant 0 : i32
    %40 = arith.cmpi eq, %arg2, %c0_i32_25 : i32
    %41 = arith.extui %40 : i1 to i32
    %c0_i32_26 = arith.constant 0 : i32
    %42 = arith.cmpi ne, %41, %c0_i32_26 : i32
    scf.if %42 {
      %c0_27 = arith.constant 0 : index
      %c0_28 = arith.constant 0 : index
      %43 = vector.load %arg9[%c0_27, %c0_28] : memref<128x128xf32, #tpu.memory_space<vmem>>, vector<128x128xf32>
      %c0_29 = arith.constant 0 : index
      %c0_30 = arith.constant 0 : index
      %44 = vector.load %arg8[%c0_29, %c0_30] : memref<128x1xf32, #tpu.memory_space<vmem>>, vector<128x1xf32>
      %45 = tpu.reciprocal %44 {approx = true} : vector<128x1xf32> -> vector<128x1xf32>
      %46 = vector.broadcast %45 : vector<128x1xf32> to vector<128x128xf32>
      %47 = arith.mulf %43, %46 : vector<128x128xf32>
      %c0_31 = arith.constant 0 : index
      %c0_32 = arith.constant 0 : index
      %c0_33 = arith.constant 0 : index
      %48 = vector.load %arg6[%c0_31, %c0_32, %c0_33] : memref<1x128x128xf32, #tpu.memory_space<vmem>>, vector<1x128x128xf32>
      %49 = vector.shape_cast %48 : vector<1x128x128xf32> to vector<128x128xf32>
      %50 = vector.shape_cast %47 : vector<128x128xf32> to vector<1x128x128xf32>
      tpu.vector_store %arg6[%c0_31, %c0_32, %c0_33], %50 {strides = array<i32>} : memref<1x128x128xf32, #tpu.memory_space<vmem>>, vector<1x128x128xf32>,
    } else {
    }
    return
  }
  func.func @transform_0(%arg0: i32, %arg1: i32, %arg2: i32) -> (i32, i32, i32) {
    %c0_i32 = arith.constant 0 : i32
    %c0_i32_0 = arith.constant 0 : i32
    return %arg0, %arg1, %c0_i32 : i32, i32, i32
  }
  func.func @transform_1(%arg0: i32, %arg1: i32, %arg2: i32) -> (i32, i32, i32) {
    %c0_i32 = arith.constant 0 : i32
    %c0_i32_0 = arith.constant 0 : i32
    return %arg0, %arg2, %c0_i32 : i32, i32, i32
  }
  func.func @transform_2(%arg0: i32, %arg1: i32, %arg2: i32) -> (i32, i32, i32) {
    %c0_i32 = arith.constant 0 : i32
    %c0_i32_0 = arith.constant 0 : i32
    return %arg0, %arg2, %c0_i32 : i32, i32, i32
  }
  func.func @transform_3(%arg0: i32, %arg1: i32, %arg2: i32) -> (i32, i32, i32) {
    %c0_i32 = arith.constant 0 : i32
    %c0_i32_0 = arith.constant 0 : i32
    return %arg0, %arg1, %c0_i32 : i32, i32, i32
  }
}

module attributes {stable_mosaic.version = 11 : i64} {
  func.func @ln_qkv_kernel(%arg0: i32, %arg1: memref<128x128xf32, #tpu.memory_space<vmem>>, %arg2: memref<1x128xf32, #tpu.memory_space<vmem>>, %arg3: memref<1x128xf32, #tpu.memory_space<vmem>>, %arg4: memref<128x384xf32, #tpu.memory_space<vmem>>, %arg5: memref<128x128xf32, #tpu.memory_space<vmem>>, %arg6: memref<128x128xf32, #tpu.memory_space<vmem>>, %arg7: memref<128x128xf32, #tpu.memory_space<vmem>>) attributes {dimension_semantics = [#tpu.dimension_semantics<parallel>], iteration_bounds = array<i64: 2>, scalar_prefetch = 0 : i64, scratch_operands = 0 : i64, tpu.core_type = #tpu.core_type<tc>, window_params = [{transform_indices = @transform_0, window_bounds = array<i64: 128, 128>}, {pipeline_mode = #tpu.pipeline_mode<synchronous>, transform_indices = @transform_1, window_bounds = array<i64: 1, 128>}, {pipeline_mode = #tpu.pipeline_mode<synchronous>, transform_indices = @transform_2, window_bounds = array<i64: 1, 128>}, {pipeline_mode = #tpu.pipeline_mode<synchronous>, transform_indices = @transform_3, window_bounds = array<i64: 128, 384>}, {transform_indices = @transform_4, window_bounds = array<i64: 128, 128>}, {transform_indices = @transform_5, window_bounds = array<i64: 128, 128>}, {transform_indices = @transform_6, window_bounds = array<i64: 128, 128>}]} {
    %c0 = arith.constant 0 : index
    %c0_0 = arith.constant 0 : index
    %0 = vector.load %arg1[%c0, %c0_0] : memref<128x128xf32, #tpu.memory_space<vmem>>, vector<128x128xf32>
    %1 = tpu.iota {dimensions = array<i32: 1>} : vector<128x128xi32>
    %c32_i32 = arith.constant 32 : i32
    %2 = vector.broadcast %c32_i32 : i32 to vector<128x128xi32>
    %3 = arith.cmpi slt, %1, %2 : vector<128x128xi32>
    %cst = arith.constant dense<0.000000e+00> : vector<128xf32>
    %4 = vector.multi_reduction <add>, %0, %cst [1] : vector<128x128xf32> to vector<128xf32>
    %5 = vector.shape_cast %4 : vector<128xf32> to vector<128x1xf32>
    %cst_1 = arith.constant 3.125000e-02 : f32
    %6 = vector.broadcast %cst_1 : f32 to vector<128x1xf32>
    %7 = arith.mulf %5, %6 : vector<128x1xf32>
    %8 = vector.broadcast %7 : vector<128x1xf32> to vector<128x128xf32>
    %9 = arith.subf %0, %8 : vector<128x128xf32>
    %cst_2 = arith.constant 0.000000e+00 : f32
    %10 = vector.broadcast %cst_2 : f32 to vector<128x128xf32>
    %11 = arith.select %3, %9, %10 : vector<128x128xi1>, vector<128x128xf32>
    %12 = arith.mulf %11, %11 : vector<128x128xf32>
    %cst_3 = arith.constant dense<0.000000e+00> : vector<128xf32>
    %13 = vector.multi_reduction <add>, %12, %cst_3 [1] : vector<128x128xf32> to vector<128xf32>
    %14 = vector.shape_cast %13 : vector<128xf32> to vector<128x1xf32>
    %cst_4 = arith.constant 3.125000e-02 : f32
    %15 = vector.broadcast %cst_4 : f32 to vector<128x1xf32>
    %16 = arith.mulf %14, %15 : vector<128x1xf32>
    %cst_5 = arith.constant 9.99999974E-6 : f32
    %17 = vector.broadcast %cst_5 : f32 to vector<128x1xf32>
    %18 = arith.addf %16, %17 : vector<128x1xf32>
    %19 = math.rsqrt %18 : vector<128x1xf32>
    %20 = vector.broadcast %19 : vector<128x1xf32> to vector<128x128xf32>
    %21 = arith.mulf %11, %20 : vector<128x128xf32>
    %c0_6 = arith.constant 0 : index
    %c0_7 = arith.constant 0 : index
    %22 = vector.load %arg2[%c0_6, %c0_7] : memref<1x128xf32, #tpu.memory_space<vmem>>, vector<1x128xf32>
    %23 = vector.broadcast %22 : vector<1x128xf32> to vector<128x128xf32>
    %24 = arith.mulf %21, %23 : vector<128x128xf32>
    %c0_8 = arith.constant 0 : index
    %c0_9 = arith.constant 0 : index
    %25 = vector.load %arg3[%c0_8, %c0_9] : memref<1x128xf32, #tpu.memory_space<vmem>>, vector<1x128xf32>
    %26 = vector.broadcast %25 : vector<1x128xf32> to vector<128x128xf32>
    %27 = arith.addf %24, %26 : vector<128x128xf32>
    %c0_10 = arith.constant 0 : index
    %c0_11 = arith.constant 0 : index
    %28 = vector.load %arg4[%c0_10, %c0_11] : memref<128x384xf32, #tpu.memory_space<vmem>>, vector<128x384xf32>
    %cst_12 = arith.constant dense<0.000000e+00> : vector<128x384xf32>
    %29 = tpu.matmul %27, %28, %cst_12 {dimension_numbers = #tpu.dot_dimension_numbers<[1], [0], [0], [1], [0, 0, 1, 1], [], []>} : vector<128x128xf32>, vector<128x384xf32>, vector<128x384xf32> -> vector<128x384xf32>
    %30 = vector.extract_strided_slice %29 {offsets = [0, 0], sizes = [128, 128], strides = [1, 1]} : vector<128x384xf32> to vector<128x128xf32>
    %c0_13 = arith.constant 0 : index
    %c0_14 = arith.constant 0 : index
    %31 = vector.load %arg5[%c0_13, %c0_14] : memref<128x128xf32, #tpu.memory_space<vmem>>, vector<128x128xf32>
    tpu.vector_store %arg5[%c0_13, %c0_14], %30 {strides = array<i32>} : memref<128x128xf32, #tpu.memory_space<vmem>>, vector<128x128xf32>,
    %32 = vector.extract_strided_slice %29 {offsets = [0, 128], sizes = [128, 128], strides = [1, 1]} : vector<128x384xf32> to vector<128x128xf32>
    %c0_15 = arith.constant 0 : index
    %c0_16 = arith.constant 0 : index
    %33 = vector.load %arg6[%c0_15, %c0_16] : memref<128x128xf32, #tpu.memory_space<vmem>>, vector<128x128xf32>
    tpu.vector_store %arg6[%c0_15, %c0_16], %32 {strides = array<i32>} : memref<128x128xf32, #tpu.memory_space<vmem>>, vector<128x128xf32>,
    %34 = vector.extract_strided_slice %29 {offsets = [0, 256], sizes = [128, 128], strides = [1, 1]} : vector<128x384xf32> to vector<128x128xf32>
    %c0_17 = arith.constant 0 : index
    %c0_18 = arith.constant 0 : index
    %35 = vector.load %arg7[%c0_17, %c0_18] : memref<128x128xf32, #tpu.memory_space<vmem>>, vector<128x128xf32>
    tpu.vector_store %arg7[%c0_17, %c0_18], %34 {strides = array<i32>} : memref<128x128xf32, #tpu.memory_space<vmem>>, vector<128x128xf32>,
    return
  }
  func.func @transform_0(%arg0: i32) -> (i32, i32) {
    %c0_i32 = arith.constant 0 : i32
    %c0_i32_0 = arith.constant 0 : i32
    return %arg0, %c0_i32 : i32, i32
  }
  func.func @transform_1(%arg0: i32) -> (i32, i32) {
    %c0_i32 = arith.constant 0 : i32
    %c0_i32_0 = arith.constant 0 : i32
    %c0_i32_1 = arith.constant 0 : i32
    return %c0_i32, %c0_i32_0 : i32, i32
  }
  func.func @transform_2(%arg0: i32) -> (i32, i32) {
    %c0_i32 = arith.constant 0 : i32
    %c0_i32_0 = arith.constant 0 : i32
    %c0_i32_1 = arith.constant 0 : i32
    return %c0_i32, %c0_i32_0 : i32, i32
  }
  func.func @transform_3(%arg0: i32) -> (i32, i32) {
    %c0_i32 = arith.constant 0 : i32
    %c0_i32_0 = arith.constant 0 : i32
    %c0_i32_1 = arith.constant 0 : i32
    return %c0_i32, %c0_i32_0 : i32, i32
  }
  func.func @transform_4(%arg0: i32) -> (i32, i32) {
    %c0_i32 = arith.constant 0 : i32
    %c0_i32_0 = arith.constant 0 : i32
    return %arg0, %c0_i32 : i32, i32
  }
  func.func @transform_5(%arg0: i32) -> (i32, i32) {
    %c0_i32 = arith.constant 0 : i32
    %c0_i32_0 = arith.constant 0 : i32
    return %arg0, %c0_i32 : i32, i32
  }
  func.func @transform_6(%arg0: i32) -> (i32, i32) {
    %c0_i32 = arith.constant 0 : i32
    %c0_i32_0 = arith.constant 0 : i32
    return %arg0, %c0_i32 : i32, i32
  }
}

</mosaic_0001>

<llo_original>
// kernel: mh_attention.2
$region0: #{mh_attention.2}
  #allocation0 [shape = 'u32[]', space=smem, size = 0x4, offset = 0x4, fixed_abs, tag = 'smem constant byte address 0x4 - core index']
  #allocation1 [shape = 'u32[72,128]{1,0:T(1,128)}', space=vmem, size = 0x9000, scoped, tag = 'internal scratch']
  %s0 = inlined_call_operand.vmem [shape: f32[256,128], index: 0, kind: input, shape index: {}]
  %s1 = inlined_call_operand.vmem [shape: f32[1,128], index: 1, kind: input, shape index: {}]
  %s2 = inlined_call_operand.vmem [shape: f32[1,128], index: 2, kind: input, shape index: {}]
  %s3 = inlined_call_operand.vmem [shape: f32[128,384], index: 3, kind: input, shape index: {}]
  %s4 = inlined_call_operand.vmem [shape: f32[256,128], index: 4, kind: output, shape index: {0}]
  %s5 = inlined_call_operand.vmem [shape: f32[256,128], index: 5, kind: output, shape index: {1}]
  %s6 = inlined_call_operand.vmem [shape: f32[256,128], index: 6, kind: output, shape index: {2}]
  %7 = xla_tuple %s4, %s5, %s6
  %s8 = sld [smem:[#allocation0]]
  $region65: #{mh_attention.2} parent=0
    _
  %s10 = ssub.s32 1, %s8
  %s11 = scalar_select 0, %s10, %s8
  loop: start=0, step=1, limit=4
  $region2: #{mh_attention.2} parent=0 // loop_pre_header
    _
  $region3: #{mh_attention.2} parent=0 // loop_header
    %s13 = sphi 0, %s17
    %p14 = scmp.ge.s32.totalorder %s13, 4
    %s23 = sphi 0, %s25
    %s26 = sphi 0, %s23
    %s27 = sphi 0, %s26
    %s43 = sphi 0, %s27
    %s47 = sphi 0, %s47
    %s49 = sphi 0, %s47
    %s50 = sphi 0, %s49
    %s64 = sphi 0, %s50
    %s68 = sphi 0, %s68
    %s70 = sphi 0, %s68
    %s71 = sphi 0, %s70
    %s85 = sphi 0, %s71
    %s89 = sphi 0, %s89
    %s91 = sphi 0, %s89
    %s92 = sphi 0, %s91
    %s106 = sphi 0, %s92
    %s112 = sphi 0, %s114
    %s115 = sphi 0, %s112
    %s116 = sphi 0, %s115
    %s132 = sphi 0, %s116
    %s138 = sphi 0, %s140
    %s141 = sphi 0, %s138
    %s142 = sphi 0, %s141
    %s158 = sphi 0, %s142
    %s164 = sphi 0, %s166
    %s167 = sphi 0, %s164
    %s168 = sphi 0, %s167
    %s184 = sphi 0, %s168
  $region4: #{mh_attention.2} parent=0 // loop_header_branch
    %16 = sbr.rel (%p14) target = $region8
  $region5: #{mh_attention.2} parent=0 // loop_body
    %s18 = ssub.s32 %s13, 1
    %s19 = ssub.s32 %s13, 2
    %s20 = sadd.s32 %s13, 1
    %s21 = ssub.s32 %s13, %s20
    %p22 = scmp.eq.s32.totalorder %s21, 0
    %s24 = sadd.s32 %s23, 1
    %s25 = scalar_select %p22, %s23, %s24
    %p28 = pneg %p22
    %p29 = scmp.eq.s32.totalorder %s13, 1
    %p30 = por %p28, %p29
    %p31 = scmp.ne.s32.totalorder %s23, %s26
    %p32 = scmp.eq.s32.totalorder %s13, 0
    %p33 = por %p31, %p32
    %p34 = scmp.ne.s32.totalorder %s23, %s26
    %p35 = scmp.eq.s32.totalorder %s18, 1
    %p36 = por %p34, %p35
    %p37 = scmp.ne.s32.totalorder %s26, %s27
    %p38 = scmp.eq.s32.totalorder %s18, 0
    %p39 = por %p37, %p38
    %p40 = scmp.ne.s32.totalorder %s26, %s27
    %p41 = scmp.eq.s32.totalorder %s19, 1
    %p42 = por %p40, %p41
    %p44 = scmp.ne.s32.totalorder %s27, %s43
    %p45 = scmp.eq.s32.totalorder %s19, 0
    %p46 = por %p44, %p45
    %s48 = sadd.s32 %s47, 1
    %p51 = scmp.eq.s32.totalorder %s13, 1
    %p52 = scmp.ne.s32.totalorder %s47, %s49
    %p53 = scmp.eq.s32.totalorder %s13, 0
    %p54 = por %p52, %p53
    %p55 = scmp.ne.s32.totalorder %s47, %s49
    %p56 = scmp.eq.s32.totalorder %s18, 1
    %p57 = por %p55, %p56
    %p58 = scmp.ne.s32.totalorder %s49, %s50
    %p59 = scmp.eq.s32.totalorder %s18, 0
    %p60 = por %p58, %p59
    %p61 = scmp.ne.s32.totalorder %s49, %s50
    %p62 = scmp.eq.s32.totalorder %s19, 1
    %p63 = por %p61, %p62
    %p65 = scmp.ne.s32.totalorder %s50, %s64
    %p66 = scmp.eq.s32.totalorder %s19, 0
    %p67 = por %p65, %p66
    %s69 = sadd.s32 %s68, 1
    %p72 = scmp.eq.s32.totalorder %s13, 1
    %p73 = scmp.ne.s32.totalorder %s68, %s70
    %p74 = scmp.eq.s32.totalorder %s13, 0
    %p75 = por %p73, %p74
    %p76 = scmp.ne.s32.totalorder %s68, %s70
    %p77 = scmp.eq.s32.totalorder %s18, 1
    %p78 = por %p76, %p77
    %p79 = scmp.ne.s32.totalorder %s70, %s71
    %p80 = scmp.eq.s32.totalorder %s18, 0
    %p81 = por %p79, %p80
    %p82 = scmp.ne.s32.totalorder %s70, %s71
    %p83 = scmp.eq.s32.totalorder %s19, 1
    %p84 = por %p82, %p83
    %p86 = scmp.ne.s32.totalorder %s71, %s85
    %p87 = scmp.eq.s32.totalorder %s19, 0
    %p88 = por %p86, %p87
    %s90 = sadd.s32 %s89, 1
    %p93 = scmp.eq.s32.totalorder %s13, 1
    %p94 = scmp.ne.s32.totalorder %s89, %s91
    %p95 = scmp.eq.s32.totalorder %s13, 0
    %p96 = por %p94, %p95
    %p97 = scmp.ne.s32.totalorder %s89, %s91
    %p98 = scmp.eq.s32.totalorder %s18, 1
    %p99 = por %p97, %p98
    %p100 = scmp.ne.s32.totalorder %s91, %s92
    %p101 = scmp.eq.s32.totalorder %s18, 0
    %p102 = por %p100, %p101
    %p103 = scmp.ne.s32.totalorder %s91, %s92
    %p104 = scmp.eq.s32.totalorder %s19, 1
    %p105 = por %p103, %p104
    %p107 = scmp.ne.s32.totalorder %s92, %s106
    %p108 = scmp.eq.s32.totalorder %s19, 0
    %p109 = por %p107, %p108
    %s110 = ssub.s32 %s13, %s20
    %p111 = scmp.eq.s32.totalorder %s110, 0
    %s113 = sadd.s32 %s112, 1
    %s114 = scalar_select %p111, %s112, %s113
    %p117 = pneg %p111
    %p118 = scmp.eq.s32.totalorder %s13, 1
    %p119 = por %p117, %p118
    %p120 = scmp.ne.s32.totalorder %s112, %s115
    %p121 = scmp.eq.s32.totalorder %s13, 0
    %p122 = por %p120, %p121
    %p123 = scmp.ne.s32.totalorder %s112, %s115
    %p124 = scmp.eq.s32.totalorder %s18, 1
    %p125 = por %p123, %p124
    %p126 = scmp.ne.s32.totalorder %s115, %s116
    %p127 = scmp.eq.s32.totalorder %s18, 0
    %p128 = por %p126, %p127
    %p129 = scmp.ne.s32.totalorder %s115, %s116
    %p130 = scmp.eq.s32.totalorder %s19, 1
    %p131 = por %p129, %p130
    %p133 = scmp.ne.s32.totalorder %s116, %s132
    %p134 = scmp.eq.s32.totalorder %s19, 0
    %p135 = por %p133, %p134
    %s136 = ssub.s32 %s13, %s20
    %p137 = scmp.eq.s32.totalorder %s136, 0
    %s139 = sadd.s32 %s138, 1
    %s140 = scalar_select %p137, %s138, %s139
    %p143 = pneg %p137
    %p144 = scmp.eq.s32.totalorder %s13, 1
    %p145 = por %p143, %p144
    %p146 = scmp.ne.s32.totalorder %s138, %s141
    %p147 = scmp.eq.s32.totalorder %s13, 0
    %p148 = por %p146, %p147
    %p149 = scmp.ne.s32.totalorder %s138, %s141
    %p150 = scmp.eq.s32.totalorder %s18, 1
    %p151 = por %p149, %p150
    %p152 = scmp.ne.s32.totalorder %s141, %s142
    %p153 = scmp.eq.s32.totalorder %s18, 0
    %p154 = por %p152, %p153
    %p155 = scmp.ne.s32.totalorder %s141, %s142
    %p156 = scmp.eq.s32.totalorder %s19, 1
    %p157 = por %p155, %p156
    %p159 = scmp.ne.s32.totalorder %s142, %s158
    %p160 = scmp.eq.s32.totalorder %s19, 0
    %p161 = por %p159, %p160
    %s162 = ssub.s32 %s13, %s20
    %p163 = scmp.eq.s32.totalorder %s162, 0
    %s165 = sadd.s32 %s164, 1
    %s166 = scalar_select %p163, %s164, %s165
    %p169 = pneg %p163
    %p170 = scmp.eq.s32.totalorder %s13, 1
    %p171 = por %p169, %p170
    %p172 = scmp.ne.s32.totalorder %s164, %s167
    %p173 = scmp.eq.s32.totalorder %s13, 0
    %p174 = por %p172, %p173
    %p175 = scmp.ne.s32.totalorder %s164, %s167
    %p176 = scmp.eq.s32.totalorder %s18, 1
    %p177 = por %p175, %p176
    %p178 = scmp.ne.s32.totalorder %s167, %s168
    %p179 = scmp.eq.s32.totalorder %s18, 0
    %p180 = por %p178, %p179
    %p181 = scmp.ne.s32.totalorder %s167, %s168
    %p182 = scmp.eq.s32.totalorder %s19, 1
    %p183 = por %p181, %p182
    %p185 = scmp.ne.s32.totalorder %s168, %s184
    %p186 = scmp.eq.s32.totalorder %s19, 0
    %p187 = por %p185, %p186
    %p188 = scmp.le.s32.totalorder 1, %s13
    %p189 = scmp.lt.s32.totalorder %s13, 3
    %p190 = pnand %p188, %p189
    %p191 = pneg %p190
    // Predicated region
    $region9: #{mh_attention.2} parent=5 // pred_check
      _
    $region10: #{mh_attention.2} parent=5 // pred_check_branch
      %193 = sbr.rel (%p190) target = $region12
    $region11: #{mh_attention.2} parent=5 // pred_region
      %s194 = ssub.s32 %s13, 1
      // Predicated region
      $region13: #{mh_attention.2} parent=11 // pred_check
        %p195 = pneg %p60
      $region14: #{mh_attention.2} parent=11 // pred_check_branch
        %197 = sbr.rel (%p195) target = $region16
      $region15: #{mh_attention.2} parent=11 // pred_region
        _
      $region16: #{mh_attention.2} parent=11 // pred_fallthru
        _
      // Predicated region
      $region17: #{mh_attention.2} parent=11 // pred_check
        %p198 = pneg %p81
      $region18: #{mh_attention.2} parent=11 // pred_check_branch
        %200 = sbr.rel (%p198) target = $region20
      $region19: #{mh_attention.2} parent=11 // pred_region
        _
      $region20: #{mh_attention.2} parent=11 // pred_fallthru
        _
      // Predicated region
      $region21: #{mh_attention.2} parent=11 // pred_check
        %p201 = pneg %p102
      $region22: #{mh_attention.2} parent=11 // pred_check_branch
        %203 = sbr.rel (%p201) target = $region24
      $region23: #{mh_attention.2} parent=11 // pred_region
        _
      $region24: #{mh_attention.2} parent=11 // pred_fallthru
        _
    $region12: #{mh_attention.2} parent=5 // pred_fallthru
      _
    %p204 = scmp.lt.s32.totalorder %s13, 2
    // Predicated region
    $region25: #{mh_attention.2} parent=5 // pred_check
      %p205 = pneg %p204
    $region26: #{mh_attention.2} parent=5 // pred_check_branch
      %207 = sbr.rel (%p205) target = $region28
    $region27: #{mh_attention.2} parent=5 // pred_region
      // Predicated region
      $region29: #{mh_attention.2} parent=27 // pred_check
        %p208 = pneg %p33
      $region30: #{mh_attention.2} parent=27 // pred_check_branch
        %210 = sbr.rel (%p208) target = $region32
      $region31: #{mh_attention.2} parent=27 // pred_region
        %s211 = smul.u32 16, %s13
        %p212 = scmp.lt.s32.totalorder %s211, 31
        %s213 = scalar_select %p212, %s211, 31
        %s214 = smul.addr %s213, 8
        %s215 = scalar_lea.vmem %s0, %s214
        %s216 = smul.u32 16, %s13
      $region32: #{mh_attention.2} parent=27 // pred_fallthru
        _
    $region28: #{mh_attention.2} parent=5 // pred_fallthru
      _
    %p217 = scmp.le.s32.totalorder 1, %s13
    %p218 = scmp.lt.s32.totalorder %s13, 3
    %p219 = pnand %p217, %p218
    %p220 = pneg %p219
    // Predicated region
    $region33: #{mh_attention.2} parent=5 // pred_check
      _
    $region34: #{mh_attention.2} parent=5 // pred_check_branch
      %222 = sbr.rel (%p219) target = $region36
    $region35: #{mh_attention.2} parent=5 // pred_region
      %s223 = ssub.s32 %s13, 1
      %s224 = smul.u32 16, %s18
      %p225 = scmp.lt.s32.totalorder %s224, 31
      %s226 = scalar_select %p225, %s224, 31
      %s227 = smul.addr %s226, 8
      %s228 = scalar_lea.vmem %s0, %s227
      %p229 = pneg %p39
      %p230 = pneg %p36
      %p231 = pneg %p60
      %p232 = pneg %p57
      %p233 = pneg %p81
      %p234 = pneg %p78
      %p235 = pneg %p102
      %p236 = pneg %p99
      %p237 = pneg %p128
      %p238 = pneg %p125
      %s239 = smul.u32 16, %s18
      %p240 = scmp.lt.s32.totalorder %s239, 31
      %s241 = scalar_select %p240, %s239, 31
      %s242 = smul.addr %s241, 8
      %s243 = scalar_lea.vmem %s4, %s242
      %p244 = pneg %p154
      %p245 = pneg %p151
      %s246 = smul.u32 16, %s18
      %p247 = scmp.lt.s32.totalorder %s246, 31
      %s248 = scalar_select %p247, %s246, 31
      %s249 = smul.addr %s248, 8
      %s250 = scalar_lea.vmem %s5, %s249
      %p251 = pneg %p180
      %p252 = pneg %p177
      %s253 = smul.u32 16, %s18
      %p254 = scmp.lt.s32.totalorder %s253, 31
      %s255 = scalar_select %p254, %s253, 31
      %s256 = smul.addr %s255, 8
      %s257 = scalar_lea.vmem %s6, %s256
      %s258 = smul.u32 16, %s18
      %p259 = scmp.lt.s32.totalorder %s258, 31
      %s260 = scalar_select %p259, %s258, 31
      %s261 = smul.addr %s260, 8
      %s262 = scalar_lea.vmem %s0, %s261
      %s263 = smul.u32 16, %s18
      %s264 = smul.u32 16, %s18
      %p265 = scmp.lt.s32.totalorder %s264, 31
      %s266 = scalar_select %p265, %s264, 31
      %s267 = smul.addr %s266, 8
      %s268 = scalar_lea.vmem %s4, %s267
      %s269 = smul.u32 16, %s18
      %s270 = smul.u32 16, %s18
      %p271 = scmp.lt.s32.totalorder %s270, 31
      %s272 = scalar_select %p271, %s270, 31
      %s273 = smul.addr %s272, 8
      %s274 = scalar_lea.vmem %s5, %s273
      %s275 = smul.u32 16, %s18
      %s276 = smul.u32 16, %s18
      %p277 = scmp.lt.s32.totalorder %s276, 31
      %s278 = scalar_select %p277, %s276, 31
      %s279 = smul.addr %s278, 8
      %s280 = scalar_lea.vmem %s6, %s279
      %s281 = smul.u32 16, %s18
      %v282 = vld [vmem:[%s262] sm:$0xff]
      %v283 = vld [vmem:[%s262 + $0x8] sm:$0xff]
      %v284 = vld [vmem:[%s262 + $0x10] sm:$0xff]
      %v285 = vld [vmem:[%s262 + $0x18] sm:$0xff]
      %v286 = vld [vmem:[%s262 + $0x20] sm:$0xff]
      %v287 = vld [vmem:[%s262 + $0x28] sm:$0xff]
      %v288 = vld [vmem:[%s262 + $0x30] sm:$0xff]
      %v289 = vld [vmem:[%s262 + $0x38] sm:$0xff]
      %v290 = vld [vmem:[%s262 + $0x40] sm:$0xff]
      %v291 = vld [vmem:[%s262 + $0x48] sm:$0xff]
      %v292 = vld [vmem:[%s262 + $0x50] sm:$0xff]
      %v293 = vld [vmem:[%s262 + $0x58] sm:$0xff]
      %v294 = vld [vmem:[%s262 + $0x60] sm:$0xff]
      %v295 = vld [vmem:[%s262 + $0x68] sm:$0xff]
      %v296 = vld [vmem:[%s262 + $0x70] sm:$0xff]
      %v297 = vld [vmem:[%s262 + $0x78] sm:$0xff]
      %v298 = vlaneseq
      %v299 = vand.u32 %v298, 127
      %vm300 = vcmp.lt.s32.totalorder %v299, 32
      %301 = vadd.xlane.f32.xlu0 %v282
      %v302 = vpop.xlane.xlu0 %301
      %303 = vadd.xlane.f32.xlu0 %v283
      %v304 = vpop.xlane.xlu0 %303
      %305 = vadd.xlane.f32.xlu0 %v284
      %v306 = vpop.xlane.xlu0 %305
      %307 = vadd.xlane.f32.xlu0 %v285
      %v308 = vpop.xlane.xlu0 %307
      %309 = vadd.xlane.f32.xlu0 %v286
      %v310 = vpop.xlane.xlu0 %309
      %311 = vadd.xlane.f32.xlu0 %v287
      %v312 = vpop.xlane.xlu0 %311
      %313 = vadd.xlane.f32.xlu0 %v288
      %v314 = vpop.xlane.xlu0 %313
      %315 = vadd.xlane.f32.xlu0 %v289
      %v316 = vpop.xlane.xlu0 %315
      %317 = vadd.xlane.f32.xlu0 %v290
      %v318 = vpop.xlane.xlu0 %317
      %319 = vadd.xlane.f32.xlu0 %v291
      %v320 = vpop.xlane.xlu0 %319
      %321 = vadd.xlane.f32.xlu0 %v292
      %v322 = vpop.xlane.xlu0 %321
      %323 = vadd.xlane.f32.xlu0 %v293
      %v324 = vpop.xlane.xlu0 %323
      %325 = vadd.xlane.f32.xlu0 %v294
      %v326 = vpop.xlane.xlu0 %325
      %327 = vadd.xlane.f32.xlu0 %v295
      %v328 = vpop.xlane.xlu0 %327
      %329 = vadd.xlane.f32.xlu0 %v296
      %v330 = vpop.xlane.xlu0 %329
      %331 = vadd.xlane.f32.xlu0 %v297
      %v332 = vpop.xlane.xlu0 %331
      %v333 = vmul.f32 %v302, 0.03125
      %v334 = vmul.f32 %v304, 0.03125
      %v335 = vmul.f32 %v306, 0.03125
      %v336 = vmul.f32 %v308, 0.03125
      %v337 = vmul.f32 %v310, 0.03125
      %v338 = vmul.f32 %v312, 0.03125
      %v339 = vmul.f32 %v314, 0.03125
      %v340 = vmul.f32 %v316, 0.03125
      %v341 = vmul.f32 %v318, 0.03125
      %v342 = vmul.f32 %v320, 0.03125
      %v343 = vmul.f32 %v322, 0.03125
      %v344 = vmul.f32 %v324, 0.03125
      %v345 = vmul.f32 %v326, 0.03125
      %v346 = vmul.f32 %v328, 0.03125
      %v347 = vmul.f32 %v330, 0.03125
      %v348 = vmul.f32 %v332, 0.03125
      %v349 = vsub.f32 %v282, %v333
      %v350 = vsub.f32 %v283, %v334
      %v351 = vsub.f32 %v284, %v335
      %v352 = vsub.f32 %v285, %v336
      %v353 = vsub.f32 %v286, %v337
      %v354 = vsub.f32 %v287, %v338
      %v355 = vsub.f32 %v288, %v339
      %v356 = vsub.f32 %v289, %v340
      %v357 = vsub.f32 %v290, %v341
      %v358 = vsub.f32 %v291, %v342
      %v359 = vsub.f32 %v292, %v343
      %v360 = vsub.f32 %v293, %v344
      %v361 = vsub.f32 %v294, %v345
      %v362 = vsub.f32 %v295, %v346
      %v363 = vsub.f32 %v296, %v347
      %v364 = vsub.f32 %v297, %v348
      %v365 = vsel %vm300, %v349, 0.0
      %v366 = vsel %vm300, %v350, 0.0
      %v367 = vsel %vm300, %v351, 0.0
      %v368 = vsel %vm300, %v352, 0.0
      %v369 = vsel %vm300, %v353, 0.0
      %v370 = vsel %vm300, %v354, 0.0
      %v371 = vsel %vm300, %v355, 0.0
      %v372 = vsel %vm300, %v356, 0.0
      %v373 = vsel %vm300, %v357, 0.0
      %v374 = vsel %vm300, %v358, 0.0
      %v375 = vsel %vm300, %v359, 0.0
      %v376 = vsel %vm300, %v360, 0.0
      %v377 = vsel %vm300, %v361, 0.0
      %v378 = vsel %vm300, %v362, 0.0
      %v379 = vsel %vm300, %v363, 0.0
      %v380 = vsel %vm300, %v364, 0.0
      %v381 = vmul.f32 %v365, %v365
      %v382 = vmul.f32 %v366, %v366
      %v383 = vmul.f32 %v367, %v367
      %v384 = vmul.f32 %v368, %v368
      %v385 = vmul.f32 %v369, %v369
      %v386 = vmul.f32 %v370, %v370
      %v387 = vmul.f32 %v371, %v371
      %v388 = vmul.f32 %v372, %v372
      %v389 = vmul.f32 %v373, %v373
      %v390 = vmul.f32 %v374, %v374
      %v391 = vmul.f32 %v375, %v375
      %v392 = vmul.f32 %v376, %v376
      %v393 = vmul.f32 %v377, %v377
      %v394 = vmul.f32 %v378, %v378
      %v395 = vmul.f32 %v379, %v379
      %v396 = vmul.f32 %v380, %v380
      %397 = vadd.xlane.f32.xlu0 %v381
      %v398 = vpop.xlane.xlu0 %397
      %399 = vadd.xlane.f32.xlu0 %v382
      %v400 = vpop.xlane.xlu0 %399
      %401 = vadd.xlane.f32.xlu0 %v383
      %v402 = vpop.xlane.xlu0 %401
      %403 = vadd.xlane.f32.xlu0 %v384
      %v404 = vpop.xlane.xlu0 %403
      %405 = vadd.xlane.f32.xlu0 %v385
      %v406 = vpop.xlane.xlu0 %405
      %407 = vadd.xlane.f32.xlu0 %v386
      %v408 = vpop.xlane.xlu0 %407
      %409 = vadd.xlane.f32.xlu0 %v387
      %v410 = vpop.xlane.xlu0 %409
      %411 = vadd.xlane.f32.xlu0 %v388
      %v412 = vpop.xlane.xlu0 %411
      %413 = vadd.xlane.f32.xlu0 %v389
      %v414 = vpop.xlane.xlu0 %413
      %415 = vadd.xlane.f32.xlu0 %v390
      %v416 = vpop.xlane.xlu0 %415
      %417 = vadd.xlane.f32.xlu0 %v391
      %v418 = vpop.xlane.xlu0 %417
      %419 = vadd.xlane.f32.xlu0 %v392
      %v420 = vpop.xlane.xlu0 %419
      %421 = vadd.xlane.f32.xlu0 %v393
      %v422 = vpop.xlane.xlu0 %421
      %423 = vadd.xlane.f32.xlu0 %v394
      %v424 = vpop.xlane.xlu0 %423
      %425 = vadd.xlane.f32.xlu0 %v395
      %v426 = vpop.xlane.xlu0 %425
      %427 = vadd.xlane.f32.xlu0 %v396
      %v428 = vpop.xlane.xlu0 %427
      %v429 = vmul.f32 %v398, 0.03125
      %v430 = vmul.f32 %v400, 0.03125
      %v431 = vmul.f32 %v402, 0.03125
      %v432 = vmul.f32 %v404, 0.03125
      %v433 = vmul.f32 %v406, 0.03125
      %v434 = vmul.f32 %v408, 0.03125
      %v435 = vmul.f32 %v410, 0.03125
      %v436 = vmul.f32 %v412, 0.03125
      %v437 = vmul.f32 %v414, 0.03125
      %v438 = vmul.f32 %v416, 0.03125
      %v439 = vmul.f32 %v418, 0.03125
      %v440 = vmul.f32 %v420, 0.03125
      %v441 = vmul.f32 %v422, 0.03125
      %v442 = vmul.f32 %v424, 0.03125
      %v443 = vmul.f32 %v426, 0.03125
      %v444 = vmul.f32 %v428, 0.03125
      %v445 = vadd.f32 %v429, 1e-05
      %v446 = vadd.f32 %v430, 1e-05
      %v447 = vadd.f32 %v431, 1e-05
      %v448 = vadd.f32 %v432, 1e-05
      %v449 = vadd.f32 %v433, 1e-05
      %v450 = vadd.f32 %v434, 1e-05
      %v451 = vadd.f32 %v435, 1e-05
      %v452 = vadd.f32 %v436, 1e-05
      %v453 = vadd.f32 %v437, 1e-05
      %v454 = vadd.f32 %v438, 1e-05
      %v455 = vadd.f32 %v439, 1e-05
      %v456 = vadd.f32 %v440, 1e-05
      %v457 = vadd.f32 %v441, 1e-05
      %v458 = vadd.f32 %v442, 1e-05
      %v459 = vadd.f32 %v443, 1e-05
      %v460 = vadd.f32 %v444, 1e-05
      %v461 = vrsqrt.pop %v445
      %v462 = vmul.f32 %v461, %v445
      %v463 = vmul.f32 %v462, %v461
      %v464 = vmul.f32 0.5, %v463
      %v465 = vsub.f32 1.5, %v464
      %v466 = vmul.f32 %v461, %v465
      %vm467 = vweird.f32 %v445
      %vm468 = vweird.f32 %v461
      %vm469 = vmor %vm467, %vm468
      %v470 = vsel %vm469, %v461, %v466
      %v471 = vrsqrt.pop %v446
      %v472 = vmul.f32 %v471, %v446
      %v473 = vmul.f32 %v472, %v471
      %v474 = vmul.f32 0.5, %v473
      %v475 = vsub.f32 1.5, %v474
      %v476 = vmul.f32 %v471, %v475
      %vm477 = vweird.f32 %v446
      %vm478 = vweird.f32 %v471
      %vm479 = vmor %vm477, %vm478
      %v480 = vsel %vm479, %v471, %v476
      %v481 = vrsqrt.pop %v447
      %v482 = vmul.f32 %v481, %v447
      %v483 = vmul.f32 %v482, %v481
      %v484 = vmul.f32 0.5, %v483
      %v485 = vsub.f32 1.5, %v484
      %v486 = vmul.f32 %v481, %v485
      %vm487 = vweird.f32 %v447
      %vm488 = vweird.f32 %v481
      %vm489 = vmor %vm487, %vm488
      %v490 = vsel %vm489, %v481, %v486
      %v491 = vrsqrt.pop %v448
      %v492 = vmul.f32 %v491, %v448
      %v493 = vmul.f32 %v492, %v491
      %v494 = vmul.f32 0.5, %v493
      %v495 = vsub.f32 1.5, %v494
      %v496 = vmul.f32 %v491, %v495
      %vm497 = vweird.f32 %v448
      %vm498 = vweird.f32 %v491
      %vm499 = vmor %vm497, %vm498
      %v500 = vsel %vm499, %v491, %v496
      %v501 = vrsqrt.pop %v449
      %v502 = vmul.f32 %v501, %v449
      %v503 = vmul.f32 %v502, %v501
      %v504 = vmul.f32 0.5, %v503
      %v505 = vsub.f32 1.5, %v504
      %v506 = vmul.f32 %v501, %v505
      %vm507 = vweird.f32 %v449
      %vm508 = vweird.f32 %v501
      %vm509 = vmor %vm507, %vm508
      %v510 = vsel %vm509, %v501, %v506
      %v511 = vrsqrt.pop %v450
      %v512 = vmul.f32 %v511, %v450
      %v513 = vmul.f32 %v512, %v511
      %v514 = vmul.f32 0.5, %v513
      %v515 = vsub.f32 1.5, %v514
      %v516 = vmul.f32 %v511, %v515
      %vm517 = vweird.f32 %v450
      %vm518 = vweird.f32 %v511
      %vm519 = vmor %vm517, %vm518
      %v520 = vsel %vm519, %v511, %v516
      %v521 = vrsqrt.pop %v451
      %v522 = vmul.f32 %v521, %v451
      %v523 = vmul.f32 %v522, %v521
      %v524 = vmul.f32 0.5, %v523
      %v525 = vsub.f32 1.5, %v524
      %v526 = vmul.f32 %v521, %v525
      %vm527 = vweird.f32 %v451
      %vm528 = vweird.f32 %v521
      %vm529 = vmor %vm527, %vm528
      %v530 = vsel %vm529, %v521, %v526
      %v531 = vrsqrt.pop %v452
      %v532 = vmul.f32 %v531, %v452
      %v533 = vmul.f32 %v532, %v531
      %v534 = vmul.f32 0.5, %v533
      %v535 = vsub.f32 1.5, %v534
      %v536 = vmul.f32 %v531, %v535
      %vm537 = vweird.f32 %v452
      %vm538 = vweird.f32 %v531
      %vm539 = vmor %vm537, %vm538
      %v540 = vsel %vm539, %v531, %v536
      %v541 = vrsqrt.pop %v453
      %v542 = vmul.f32 %v541, %v453
      %v543 = vmul.f32 %v542, %v541
      %v544 = vmul.f32 0.5, %v543
      %v545 = vsub.f32 1.5, %v544
      %v546 = vmul.f32 %v541, %v545
      %vm547 = vweird.f32 %v453
      %vm548 = vweird.f32 %v541
      %vm549 = vmor %vm547, %vm548
      %v550 = vsel %vm549, %v541, %v546
      %v551 = vrsqrt.pop %v454
      %v552 = vmul.f32 %v551, %v454
      %v553 = vmul.f32 %v552, %v551
      %v554 = vmul.f32 0.5, %v553
      %v555 = vsub.f32 1.5, %v554
      %v556 = vmul.f32 %v551, %v555
      %vm557 = vweird.f32 %v454
      %vm558 = vweird.f32 %v551
      %vm559 = vmor %vm557, %vm558
      %v560 = vsel %vm559, %v551, %v556
      %v561 = vrsqrt.pop %v455
      %v562 = vmul.f32 %v561, %v455
      %v563 = vmul.f32 %v562, %v561
      %v564 = vmul.f32 0.5, %v563
      %v565 = vsub.f32 1.5, %v564
      %v566 = vmul.f32 %v561, %v565
      %vm567 = vweird.f32 %v455
      %vm568 = vweird.f32 %v561
      %vm569 = vmor %vm567, %vm568
      %v570 = vsel %vm569, %v561, %v566
      %v571 = vrsqrt.pop %v456
      %v572 = vmul.f32 %v571, %v456
      %v573 = vmul.f32 %v572, %v571
      %v574 = vmul.f32 0.5, %v573
      %v575 = vsub.f32 1.5, %v574
      %v576 = vmul.f32 %v571, %v575
      %vm577 = vweird.f32 %v456
      %vm578 = vweird.f32 %v571
      %vm579 = vmor %vm577, %vm578
      %v580 = vsel %vm579, %v571, %v576
      %v581 = vrsqrt.pop %v457
      %v582 = vmul.f32 %v581, %v457
      %v583 = vmul.f32 %v582, %v581
      %v584 = vmul.f32 0.5, %v583
      %v585 = vsub.f32 1.5, %v584
      %v586 = vmul.f32 %v581, %v585
      %vm587 = vweird.f32 %v457
      %vm588 = vweird.f32 %v581
      %vm589 = vmor %vm587, %vm588
      %v590 = vsel %vm589, %v581, %v586
      %v591 = vrsqrt.pop %v458
      %v592 = vmul.f32 %v591, %v458
      %v593 = vmul.f32 %v592, %v591
      %v594 = vmul.f32 0.5, %v593
      %v595 = vsub.f32 1.5, %v594
      %v596 = vmul.f32 %v591, %v595
      %vm597 = vweird.f32 %v458
      %vm598 = vweird.f32 %v591
      %vm599 = vmor %vm597, %vm598
      %v600 = vsel %vm599, %v591, %v596
      %v601 = vrsqrt.pop %v459
      %v602 = vmul.f32 %v601, %v459
      %v603 = vmul.f32 %v602, %v601
      %v604 = vmul.f32 0.5, %v603
      %v605 = vsub.f32 1.5, %v604
      %v606 = vmul.f32 %v601, %v605
      %vm607 = vweird.f32 %v459
      %vm608 = vweird.f32 %v601
      %vm609 = vmor %vm607, %vm608
      %v610 = vsel %vm609, %v601, %v606
      %v611 = vrsqrt.pop %v460
      %v612 = vmul.f32 %v611, %v460
      %v613 = vmul.f32 %v612, %v611
      %v614 = vmul.f32 0.5, %v613
      %v615 = vsub.f32 1.5, %v614
      %v616 = vmul.f32 %v611, %v615
      %vm617 = vweird.f32 %v460
      %vm618 = vweird.f32 %v611
      %vm619 = vmor %vm617, %vm618
      %v620 = vsel %vm619, %v611, %v616
      %v621 = vmul.f32 %v365, %v470
      %v622 = vmul.f32 %v366, %v480
      %v623 = vmul.f32 %v367, %v490
      %v624 = vmul.f32 %v368, %v500
      %v625 = vmul.f32 %v369, %v510
      %v626 = vmul.f32 %v370, %v520
      %v627 = vmul.f32 %v371, %v530
      %v628 = vmul.f32 %v372, %v540
      %v629 = vmul.f32 %v373, %v550
      %v630 = vmul.f32 %v374, %v560
      %v631 = vmul.f32 %v375, %v570
      %v632 = vmul.f32 %v376, %v580
      %v633 = vmul.f32 %v377, %v590
      %v634 = vmul.f32 %v378, %v600
      %v635 = vmul.f32 %v379, %v610
      %v636 = vmul.f32 %v380, %v620
      %v637 = vld [vmem:[%s1] sm:$0x1]
      %v639 = vperm.slane %v637, 0
      %v641 = vmul.f32 %v621, %v639
      %v642 = vmul.f32 %v622, %v639
      %v643 = vmul.f32 %v623, %v639
      %v644 = vmul.f32 %v624, %v639
      %v645 = vmul.f32 %v625, %v639
      %v646 = vmul.f32 %v626, %v639
      %v647 = vmul.f32 %v627, %v639
      %v648 = vmul.f32 %v628, %v639
      %v649 = vmul.f32 %v629, %v639
      %v650 = vmul.f32 %v630, %v639
      %v651 = vmul.f32 %v631, %v639
      %v652 = vmul.f32 %v632, %v639
      %v653 = vmul.f32 %v633, %v639
      %v654 = vmul.f32 %v634, %v639
      %v655 = vmul.f32 %v635, %v639
      %v656 = vmul.f32 %v636, %v639
      %v657 = vld [vmem:[%s2] sm:$0x1]
      %v659 = vperm.slane %v657, 0
      %v661 = vadd.f32 %v641, %v659
      %v662 = vadd.f32 %v642, %v659
      %v663 = vadd.f32 %v643, %v659
      %v664 = vadd.f32 %v644, %v659
      %v665 = vadd.f32 %v645, %v659
      %v666 = vadd.f32 %v646, %v659
      %v667 = vadd.f32 %v647, %v659
      %v668 = vadd.f32 %v648, %v659
      %v669 = vadd.f32 %v649, %v659
      %v670 = vadd.f32 %v650, %v659
      %v671 = vadd.f32 %v651, %v659
      %v672 = vadd.f32 %v652, %v659
      %v673 = vadd.f32 %v653, %v659
      %v674 = vadd.f32 %v654, %v659
      %v675 = vadd.f32 %v655, %v659
      %v676 = vadd.f32 %v656, %v659
      %v677 = vld [vmem:[%s3] sm:$0xff]
      %v678 = vld [vmem:[%s3 + $0x8] sm:$0xff]
      %v679 = vld [vmem:[%s3 + $0x10] sm:$0xff]
      %v680 = vld [vmem:[%s3 + $0x18] sm:$0xff]
      %v681 = vld [vmem:[%s3 + $0x20] sm:$0xff]
      %v682 = vld [vmem:[%s3 + $0x28] sm:$0xff]
      %v683 = vld [vmem:[%s3 + $0x30] sm:$0xff]
      %v684 = vld [vmem:[%s3 + $0x38] sm:$0xff]
      %v685 = vld [vmem:[%s3 + $0x40] sm:$0xff]
      %v686 = vld [vmem:[%s3 + $0x48] sm:$0xff]
      %v687 = vld [vmem:[%s3 + $0x50] sm:$0xff]
      %v688 = vld [vmem:[%s3 + $0x58] sm:$0xff]
      %v689 = vld [vmem:[%s3 + $0x60] sm:$0xff]
      %v690 = vld [vmem:[%s3 + $0x68] sm:$0xff]
      %v691 = vld [vmem:[%s3 + $0x70] sm:$0xff]
      %v692 = vld [vmem:[%s3 + $0x78] sm:$0xff]
      %v693 = vld [vmem:[%s3 + $0x80] sm:$0xff]
      %v694 = vld [vmem:[%s3 + $0x88] sm:$0xff]
      %v695 = vld [vmem:[%s3 + $0x90] sm:$0xff]
      %v696 = vld [vmem:[%s3 + $0x98] sm:$0xff]
      %v697 = vld [vmem:[%s3 + $0xa0] sm:$0xff]
      %v698 = vld [vmem:[%s3 + $0xa8] sm:$0xff]
      %v699 = vld [vmem:[%s3 + $0xb0] sm:$0xff]
      %v700 = vld [vmem:[%s3 + $0xb8] sm:$0xff]
      %v701 = vld [vmem:[%s3 + $0xc0] sm:$0xff]
      %v702 = vld [vmem:[%s3 + $0xc8] sm:$0xff]
      %v703 = vld [vmem:[%s3 + $0xd0] sm:$0xff]
      %v704 = vld [vmem:[%s3 + $0xd8] sm:$0xff]
      %v705 = vld [vmem:[%s3 + $0xe0] sm:$0xff]
      %v706 = vld [vmem:[%s3 + $0xe8] sm:$0xff]
      %v707 = vld [vmem:[%s3 + $0xf0] sm:$0xff]
      %v708 = vld [vmem:[%s3 + $0xf8] sm:$0xff]
      %v709 = vld [vmem:[%s3 + $0x100] sm:$0xff]
      %v710 = vld [vmem:[%s3 + $0x108] sm:$0xff]
      %v711 = vld [vmem:[%s3 + $0x110] sm:$0xff]
      %v712 = vld [vmem:[%s3 + $0x118] sm:$0xff]
      %v713 = vld [vmem:[%s3 + $0x120] sm:$0xff]
      %v714 = vld [vmem:[%s3 + $0x128] sm:$0xff]
      %v715 = vld [vmem:[%s3 + $0x130] sm:$0xff]
      %v716 = vld [vmem:[%s3 + $0x138] sm:$0xff]
      %v717 = vld [vmem:[%s3 + $0x140] sm:$0xff]
      %v718 = vld [vmem:[%s3 + $0x148] sm:$0xff]
      %v719 = vld [vmem:[%s3 + $0x150] sm:$0xff]
      %v720 = vld [vmem:[%s3 + $0x158] sm:$0xff]
      %v721 = vld [vmem:[%s3 + $0x160] sm:$0xff]
      %v722 = vld [vmem:[%s3 + $0x168] sm:$0xff]
      %v723 = vld [vmem:[%s3 + $0x170] sm:$0xff]
      %v724 = vld [vmem:[%s3 + $0x178] sm:$0xff]
      %725 = vmatpush.msra.mxu0 %v722
      %726 = vmatpush.msra.mxu0 %v719
      %727 = vmatpush.msra.mxu0 %v716
      %728 = vmatpush.msra.mxu0 %v713
      %729 = vmatpush.msra.mxu0 %v710
      %730 = vmatpush.msra.mxu0 %v707
      %731 = vmatpush.msra.mxu0 %v704
      %732 = vmatpush.msra.mxu0 %v701
      %733 = vmatpush.msra.mxu0 %v698
      %734 = vmatpush.msra.mxu0 %v695
      %735 = vmatpush.msra.mxu0 %v692
      %736 = vmatpush.msra.mxu0 %v689
      %737 = vmatpush.msra.mxu0 %v686
      %738 = vmatpush.msra.mxu0 %v683
      %739 = vmatpush.msra.mxu0 %v680
      %740 = vmatpush.msra.mxu0 %v677
      %741 = vmatmul.f32.gmra.mxu0 %v661
      %v742 = vpop.f32.mrf.mxu0
      %v743 = vadd.f32 0.0, %v742
      %744 = vmatmul.f32.gmra.mxu0 %v662
      %v745 = vpop.f32.mrf.mxu0
      %v746 = vadd.f32 0.0, %v745
      %747 = vmatmul.f32.gmra.mxu0 %v663
      %v748 = vpop.f32.mrf.mxu0
      %v749 = vadd.f32 0.0, %v748
      %750 = vmatmul.f32.gmra.mxu0 %v664
      %v751 = vpop.f32.mrf.mxu0
      %v752 = vadd.f32 0.0, %v751
      %753 = vmatmul.f32.gmra.mxu0 %v665
      %v754 = vpop.f32.mrf.mxu0
      %v755 = vadd.f32 0.0, %v754
      %756 = vmatmul.f32.gmra.mxu0 %v666
      %v757 = vpop.f32.mrf.mxu0
      %v758 = vadd.f32 0.0, %v757
      %759 = vmatmul.f32.gmra.mxu0 %v667
      %v760 = vpop.f32.mrf.mxu0
      %v761 = vadd.f32 0.0, %v760
      %762 = vmatmul.f32.gmra.mxu0 %v668
      %v763 = vpop.f32.mrf.mxu0
      %v764 = vadd.f32 0.0, %v763
      %765 = vmatmul.f32.gmra.mxu0 %v669
      %v766 = vpop.f32.mrf.mxu0
      %v767 = vadd.f32 0.0, %v766
      %768 = vmatmul.f32.gmra.mxu0 %v670
      %v769 = vpop.f32.mrf.mxu0
      %v770 = vadd.f32 0.0, %v769
      %771 = vmatmul.f32.gmra.mxu0 %v671
      %v772 = vpop.f32.mrf.mxu0
      %v773 = vadd.f32 0.0, %v772
      %774 = vmatmul.f32.gmra.mxu0 %v672
      %v775 = vpop.f32.mrf.mxu0
      %v776 = vadd.f32 0.0, %v775
      %777 = vmatmul.f32.gmra.mxu0 %v673
      %v778 = vpop.f32.mrf.mxu0
      %v779 = vadd.f32 0.0, %v778
      %780 = vmatmul.f32.gmra.mxu0 %v674
      %v781 = vpop.f32.mrf.mxu0
      %v782 = vadd.f32 0.0, %v781
      %783 = vmatmul.f32.gmra.mxu0 %v675
      %v784 = vpop.f32.mrf.mxu0
      %v785 = vadd.f32 0.0, %v784
      %786 = vmatmul.f32.gmra.mxu0 %v676
      %v787 = vpop.f32.mrf.mxu0
      %v788 = vadd.f32 0.0, %v787
      %789 = vdwg.mxu0
      %790 = vmatpush.msra.mxu0 %v723
      %791 = vmatpush.msra.mxu0 %v720
      %792 = vmatpush.msra.mxu0 %v717
      %793 = vmatpush.msra.mxu0 %v714
      %794 = vmatpush.msra.mxu0 %v711
      %795 = vmatpush.msra.mxu0 %v708
      %796 = vmatpush.msra.mxu0 %v705
      %797 = vmatpush.msra.mxu0 %v702
      %798 = vmatpush.msra.mxu0 %v699
      %799 = vmatpush.msra.mxu0 %v696
      %800 = vmatpush.msra.mxu0 %v693
      %801 = vmatpush.msra.mxu0 %v690
      %802 = vmatpush.msra.mxu0 %v687
      %803 = vmatpush.msra.mxu0 %v684
      %804 = vmatpush.msra.mxu0 %v681
      %805 = vmatpush.msra.mxu0 %v678
      %806 = vmatmul.f32.gmra.mxu0 %v661
      %v807 = vpop.f32.mrf.mxu0
      %v808 = vadd.f32 0.0, %v807
      %809 = vmatmul.f32.gmra.mxu0 %v662
      %v810 = vpop.f32.mrf.mxu0
      %v811 = vadd.f32 0.0, %v810
      %812 = vmatmul.f32.gmra.mxu0 %v663
      %v813 = vpop.f32.mrf.mxu0
      %v814 = vadd.f32 0.0, %v813
      %815 = vmatmul.f32.gmra.mxu0 %v664
      %v816 = vpop.f32.mrf.mxu0
      %v817 = vadd.f32 0.0, %v816
      %818 = vmatmul.f32.gmra.mxu0 %v665
      %v819 = vpop.f32.mrf.mxu0
      %v820 = vadd.f32 0.0, %v819
      %821 = vmatmul.f32.gmra.mxu0 %v666
      %v822 = vpop.f32.mrf.mxu0
      %v823 = vadd.f32 0.0, %v822
      %824 = vmatmul.f32.gmra.mxu0 %v667
      %v825 = vpop.f32.mrf.mxu0
      %v826 = vadd.f32 0.0, %v825
      %827 = vmatmul.f32.gmra.mxu0 %v668
      %v828 = vpop.f32.mrf.mxu0
      %v829 = vadd.f32 0.0, %v828
      %830 = vmatmul.f32.gmra.mxu0 %v669
      %v831 = vpop.f32.mrf.mxu0
      %v832 = vadd.f32 0.0, %v831
      %833 = vmatmul.f32.gmra.mxu0 %v670
      %v834 = vpop.f32.mrf.mxu0
      %v835 = vadd.f32 0.0, %v834
      %836 = vmatmul.f32.gmra.mxu0 %v671
      %v837 = vpop.f32.mrf.mxu0
      %v838 = vadd.f32 0.0, %v837
      %839 = vmatmul.f32.gmra.mxu0 %v672
      %v840 = vpop.f32.mrf.mxu0
      %v841 = vadd.f32 0.0, %v840
      %842 = vmatmul.f32.gmra.mxu0 %v673
      %v843 = vpop.f32.mrf.mxu0
      %v844 = vadd.f32 0.0, %v843
      %845 = vmatmul.f32.gmra.mxu0 %v674
      %v846 = vpop.f32.mrf.mxu0
      %v847 = vadd.f32 0.0, %v846
      %848 = vmatmul.f32.gmra.mxu0 %v675
      %v849 = vpop.f32.mrf.mxu0
      %v850 = vadd.f32 0.0, %v849
      %851 = vmatmul.f32.gmra.mxu0 %v676
      %v852 = vpop.f32.mrf.mxu0
      %v853 = vadd.f32 0.0, %v852
      %854 = vdwg.mxu0
      %855 = vmatpush.msra.mxu0 %v724
      %856 = vmatpush.msra.mxu0 %v721
      %857 = vmatpush.msra.mxu0 %v718
      %858 = vmatpush.msra.mxu0 %v715
      %859 = vmatpush.msra.mxu0 %v712
      %860 = vmatpush.msra.mxu0 %v709
      %861 = vmatpush.msra.mxu0 %v706
      %862 = vmatpush.msra.mxu0 %v703
      %863 = vmatpush.msra.mxu0 %v700
      %864 = vmatpush.msra.mxu0 %v697
      %865 = vmatpush.msra.mxu0 %v694
      %866 = vmatpush.msra.mxu0 %v691
      %867 = vmatpush.msra.mxu0 %v688
      %868 = vmatpush.msra.mxu0 %v685
      %869 = vmatpush.msra.mxu0 %v682
      %870 = vmatpush.msra.mxu0 %v679
      %871 = vmatmul.f32.gmra.mxu0 %v661
      %v872 = vpop.f32.mrf.mxu0
      %v873 = vadd.f32 0.0, %v872
      %874 = vmatmul.f32.gmra.mxu0 %v662
      %v875 = vpop.f32.mrf.mxu0
      %v876 = vadd.f32 0.0, %v875
      %877 = vmatmul.f32.gmra.mxu0 %v663
      %v878 = vpop.f32.mrf.mxu0
      %v879 = vadd.f32 0.0, %v878
      %880 = vmatmul.f32.gmra.mxu0 %v664
      %v881 = vpop.f32.mrf.mxu0
      %v882 = vadd.f32 0.0, %v881
      %883 = vmatmul.f32.gmra.mxu0 %v665
      %v884 = vpop.f32.mrf.mxu0
      %v885 = vadd.f32 0.0, %v884
      %886 = vmatmul.f32.gmra.mxu0 %v666
      %v887 = vpop.f32.mrf.mxu0
      %v888 = vadd.f32 0.0, %v887
      %889 = vmatmul.f32.gmra.mxu0 %v667
      %v890 = vpop.f32.mrf.mxu0
      %v891 = vadd.f32 0.0, %v890
      %892 = vmatmul.f32.gmra.mxu0 %v668
      %v893 = vpop.f32.mrf.mxu0
      %v894 = vadd.f32 0.0, %v893
      %895 = vmatmul.f32.gmra.mxu0 %v669
      %v896 = vpop.f32.mrf.mxu0
      %v897 = vadd.f32 0.0, %v896
      %898 = vmatmul.f32.gmra.mxu0 %v670
      %v899 = vpop.f32.mrf.mxu0
      %v900 = vadd.f32 0.0, %v899
      %901 = vmatmul.f32.gmra.mxu0 %v671
      %v902 = vpop.f32.mrf.mxu0
      %v903 = vadd.f32 0.0, %v902
      %904 = vmatmul.f32.gmra.mxu0 %v672
      %v905 = vpop.f32.mrf.mxu0
      %v906 = vadd.f32 0.0, %v905
      %907 = vmatmul.f32.gmra.mxu0 %v673
      %v908 = vpop.f32.mrf.mxu0
      %v909 = vadd.f32 0.0, %v908
      %910 = vmatmul.f32.gmra.mxu0 %v674
      %v911 = vpop.f32.mrf.mxu0
      %v912 = vadd.f32 0.0, %v911
      %913 = vmatmul.f32.gmra.mxu0 %v675
      %v914 = vpop.f32.mrf.mxu0
      %v915 = vadd.f32 0.0, %v914
      %916 = vmatmul.f32.gmra.mxu0 %v676
      %v917 = vpop.f32.mrf.mxu0
      %v918 = vadd.f32 0.0, %v917
      %919 = vdwg.mxu0
      %920 = vst [vmem:[%s268] sm:$0xff] %v743
      %921 = vst [vmem:[%s268 + $0x8] sm:$0xff] %v746
      %922 = vst [vmem:[%s268 + $0x10] sm:$0xff] %v749
      %923 = vst [vmem:[%s268 + $0x18] sm:$0xff] %v752
      %924 = vst [vmem:[%s268 + $0x20] sm:$0xff] %v755
      %925 = vst [vmem:[%s268 + $0x28] sm:$0xff] %v758
      %926 = vst [vmem:[%s268 + $0x30] sm:$0xff] %v761
      %927 = vst [vmem:[%s268 + $0x38] sm:$0xff] %v764
      %928 = vst [vmem:[%s268 + $0x40] sm:$0xff] %v767
      %929 = vst [vmem:[%s268 + $0x48] sm:$0xff] %v770
      %930 = vst [vmem:[%s268 + $0x50] sm:$0xff] %v773
      %931 = vst [vmem:[%s268 + $0x58] sm:$0xff] %v776
      %932 = vst [vmem:[%s268 + $0x60] sm:$0xff] %v779
      %933 = vst [vmem:[%s268 + $0x68] sm:$0xff] %v782
      %934 = vst [vmem:[%s268 + $0x70] sm:$0xff] %v785
      %935 = vst [vmem:[%s268 + $0x78] sm:$0xff] %v788
      %936 = vst [vmem:[%s274] sm:$0xff] %v808
      %937 = vst [vmem:[%s274 + $0x8] sm:$0xff] %v811
      %938 = vst [vmem:[%s274 + $0x10] sm:$0xff] %v814
      %939 = vst [vmem:[%s274 + $0x18] sm:$0xff] %v817
      %940 = vst [vmem:[%s274 + $0x20] sm:$0xff] %v820
      %941 = vst [vmem:[%s274 + $0x28] sm:$0xff] %v823
      %942 = vst [vmem:[%s274 + $0x30] sm:$0xff] %v826
      %943 = vst [vmem:[%s274 + $0x38] sm:$0xff] %v829
      %944 = vst [vmem:[%s274 + $0x40] sm:$0xff] %v832
      %945 = vst [vmem:[%s274 + $0x48] sm:$0xff] %v835
      %946 = vst [vmem:[%s274 + $0x50] sm:$0xff] %v838
      %947 = vst [vmem:[%s274 + $0x58] sm:$0xff] %v841
      %948 = vst [vmem:[%s274 + $0x60] sm:$0xff] %v844
      %949 = vst [vmem:[%s274 + $0x68] sm:$0xff] %v847
      %950 = vst [vmem:[%s274 + $0x70] sm:$0xff] %v850
      %951 = vst [vmem:[%s274 + $0x78] sm:$0xff] %v853
      %952 = vst [vmem:[%s280] sm:$0xff] %v873
      %953 = vst [vmem:[%s280 + $0x8] sm:$0xff] %v876
      %954 = vst [vmem:[%s280 + $0x10] sm:$0xff] %v879
      %955 = vst [vmem:[%s280 + $0x18] sm:$0xff] %v882
      %956 = vst [vmem:[%s280 + $0x20] sm:$0xff] %v885
      %957 = vst [vmem:[%s280 + $0x28] sm:$0xff] %v888
      %958 = vst [vmem:[%s280 + $0x30] sm:$0xff] %v891
      %959 = vst [vmem:[%s280 + $0x38] sm:$0xff] %v894
      %960 = vst [vmem:[%s280 + $0x40] sm:$0xff] %v897
      %961 = vst [vmem:[%s280 + $0x48] sm:$0xff] %v900
      %962 = vst [vmem:[%s280 + $0x50] sm:$0xff] %v903
      %963 = vst [vmem:[%s280 + $0x58] sm:$0xff] %v906
      %964 = vst [vmem:[%s280 + $0x60] sm:$0xff] %v909
      %965 = vst [vmem:[%s280 + $0x68] sm:$0xff] %v912
      %966 = vst [vmem:[%s280 + $0x70] sm:$0xff] %v915
      %967 = vst [vmem:[%s280 + $0x78] sm:$0xff] %v918
      %s968 = smul.u32 16, %s18
      %p969 = scmp.lt.s32.totalorder %s968, 31
      %s970 = scalar_select %p969, %s968, 31
      %s971 = smul.addr %s970, 8
      %s972 = scalar_lea.vmem %s4, %s971
      %s973 = smul.u32 16, %s18
      %p974 = scmp.lt.s32.totalorder %s973, 31
      %s975 = scalar_select %p974, %s973, 31
      %s976 = smul.addr %s975, 8
      %s977 = scalar_lea.vmem %s5, %s976
      %s978 = smul.u32 16, %s18
      %p979 = scmp.lt.s32.totalorder %s978, 31
      %s980 = scalar_select %p979, %s978, 31
      %s981 = smul.addr %s980, 8
      %s982 = scalar_lea.vmem %s6, %s981
      // Predicated region
      $region37: #{mh_attention.2} parent=35 // pred_check
        %p983 = pneg %p125
      $region38: #{mh_attention.2} parent=35 // pred_check_branch
        %985 = sbr.rel (%p983) target = $region40
      $region39: #{mh_attention.2} parent=35 // pred_region
        %s986 = smul.u32 16, %s18
      $region40: #{mh_attention.2} parent=35 // pred_fallthru
        _
      // Predicated region
      $region41: #{mh_attention.2} parent=35 // pred_check
        %p987 = pneg %p151
      $region42: #{mh_attention.2} parent=35 // pred_check_branch
        %989 = sbr.rel (%p987) target = $region44
      $region43: #{mh_attention.2} parent=35 // pred_region
        %s990 = smul.u32 16, %s18
      $region44: #{mh_attention.2} parent=35 // pred_fallthru
        _
      // Predicated region
      $region45: #{mh_attention.2} parent=35 // pred_check
        %p991 = pneg %p177
      $region46: #{mh_attention.2} parent=35 // pred_check_branch
        %993 = sbr.rel (%p991) target = $region48
      $region47: #{mh_attention.2} parent=35 // pred_region
        %s994 = smul.u32 16, %s18
      $region48: #{mh_attention.2} parent=35 // pred_fallthru
        _
    $region36: #{mh_attention.2} parent=5 // pred_fallthru
      _
    %p995 = scmp.le.s32.totalorder 2, %s13
    // Predicated region
    $region49: #{mh_attention.2} parent=5 // pred_check
      %p996 = pneg %p995
    $region50: #{mh_attention.2} parent=5 // pred_check_branch
      %998 = sbr.rel (%p996) target = $region52
    $region51: #{mh_attention.2} parent=5 // pred_region
      %s999 = ssub.s32 %s13, 2
      // Predicated region
      $region53: #{mh_attention.2} parent=51 // pred_check
        %p1000 = pneg %p131
      $region54: #{mh_attention.2} parent=51 // pred_check_branch
        %1002 = sbr.rel (%p1000) target = $region56
      $region55: #{mh_attention.2} parent=51 // pred_region
        %s1003 = smul.u32 16, %s19
        %p1004 = scmp.lt.s32.totalorder %s1003, 31
        %s1005 = scalar_select %p1004, %s1003, 31
        %s1006 = smul.addr %s1005, 8
        %s1007 = scalar_lea.vmem %s4, %s1006
      $region56: #{mh_attention.2} parent=51 // pred_fallthru
        _
      // Predicated region
      $region57: #{mh_attention.2} parent=51 // pred_check
        %p1008 = pneg %p157
      $region58: #{mh_attention.2} parent=51 // pred_check_branch
        %1010 = sbr.rel (%p1008) target = $region60
      $region59: #{mh_attention.2} parent=51 // pred_region
        %s1011 = smul.u32 16, %s19
        %p1012 = scmp.lt.s32.totalorder %s1011, 31
        %s1013 = scalar_select %p1012, %s1011, 31
        %s1014 = smul.addr %s1013, 8
        %s1015 = scalar_lea.vmem %s5, %s1014
      $region60: #{mh_attention.2} parent=51 // pred_fallthru
        _
      // Predicated region
      $region61: #{mh_attention.2} parent=51 // pred_check
        %p1016 = pneg %p183
      $region62: #{mh_attention.2} parent=51 // pred_check_branch
        %1018 = sbr.rel (%p1016) target = $region64
      $region63: #{mh_attention.2} parent=51 // pred_region
        %s1019 = smul.u32 16, %s19
        %p1020 = scmp.lt.s32.totalorder %s1019, 31
        %s1021 = scalar_select %p1020, %s1019, 31
        %s1022 = smul.addr %s1021, 8
        %s1023 = scalar_lea.vmem %s6, %s1022
      $region64: #{mh_attention.2} parent=51 // pred_fallthru
        _
    $region52: #{mh_attention.2} parent=5 // pred_fallthru
      _
  $region6: #{mh_attention.2} parent=0 // loop_footer
    %s17 = sadd.s32 1, %s13
  $region7: #{mh_attention.2} parent=0 // loop_footer_branch
    %12 = sbr.rel target = $region3
  $region8: #{mh_attention.2} parent=0 // loop_exit
    _

// kernel: mh_attention.3
$region0: #{mh_attention.3}
  #allocation0 [shape = 'u32[]', space=smem, size = 0x4, offset = 0x4, fixed_abs, tag = 'smem constant byte address 0x4 - core index']
  #allocation1 [shape = 'u32[72,128]{1,0:T(1,128)}', space=vmem, size = 0x9000, scoped, tag = 'internal scratch']
  #allocation2 [shape = 'f32[128,1]{1,0:T(8,128)}', space=vmem, size = 0x10000, scoped, tag = 'scratch operand']
  #allocation3 [shape = 'f32[128,1]{1,0:T(8,128)}', space=vmem, size = 0x10000, scoped, tag = 'scratch operand']
  #allocation4 [shape = 'f32[128,128]{1,0:T(8,128)}', space=vmem, size = 0x10000, scoped, tag = 'scratch operand']
  %s0 = inlined_call_operand.vmem [shape: f32[2,128,128], index: 0, kind: input, shape index: {}]
  %s1 = inlined_call_operand.vmem [shape: f32[2,128,128], index: 1, kind: input, shape index: {}]
  %s2 = inlined_call_operand.vmem [shape: f32[2,128,128], index: 2, kind: input, shape index: {}]
  %s3 = inlined_call_operand.vmem [shape: f32[2,128,128], index: 3, kind: output, shape index: {}]
  %s4 = sld [smem:[#allocation0]]
  $region53: #{mh_attention.3} parent=0
    _
  %s6 = ssub.s32 1, %s4
  %s7 = scalar_select 0, %s6, %s4
  loop: start=0, step=1, limit=4
  $region2: #{mh_attention.3} parent=0 // loop_pre_header
    _
  $region3: #{mh_attention.3} parent=0 // loop_header
    %s9 = sphi 0, %s13
    %p10 = scmp.ge.s32.totalorder %s9, 4
    %s16 = sphi 0, %s35
    %s17 = sphi 0, %s31
    %s18 = sphi 0, %s27
    %s19 = sphi 0, %s16
    %s20 = sphi 0, %s17
    %s21 = sphi 0, %s18
    %s22 = sphi 0, %s19
    %s23 = sphi 0, %s20
    %s24 = sphi 0, %s21
    %s40 = sphi 0, %s42
    %s43 = sphi 0, %s40
    %s44 = sphi 0, %s43
    %s60 = sphi 0, %s44
    %s68 = sphi 0, %s70
    %s71 = sphi 0, %s68
    %s72 = sphi 0, %s71
    %s88 = sphi 0, %s72
    %s96 = sphi 0, %s98
    %s99 = sphi 0, %s96
    %s100 = sphi 0, %s99
    %s116 = sphi 0, %s100
    %s124 = sphi 0, %s126
    %s127 = sphi 0, %s124
    %s128 = sphi 0, %s127
    %s144 = sphi 0, %s128
  $region4: #{mh_attention.3} parent=0 // loop_header_branch
    %12 = sbr.rel (%p10) target = $region8
  $region5: #{mh_attention.3} parent=0 // loop_body
    %s14 = ssub.s32 %s9, 1
    %s15 = ssub.s32 %s9, 2
    %s25 = sadd.s32 1, %s18
    %p26 = scmp.ge.s32.totalorder %s25, 1
    %s27 = scalar_select %p26, 0, %s25
    %s28 = sadd.s32 1, %s17
    %s29 = scalar_select %p26, %s28, %s17
    %p30 = scmp.ge.s32.totalorder %s29, 1
    %s31 = scalar_select %p30, 0, %s29
    %s32 = sadd.s32 1, %s16
    %s33 = scalar_select %p30, %s32, %s16
    %p34 = scmp.ge.s32.totalorder %s33, 2
    %s35 = scalar_select %p34, 0, %s33
    %s36 = ssub.s32 %s16, %s35
    %s37 = ssub.s32 %s17, %s31
    %s38 = sor.u32 %s36, %s37
    %p39 = scmp.eq.s32.totalorder %s38, 0
    %s41 = sadd.s32 %s40, 1
    %s42 = scalar_select %p39, %s40, %s41
    %p45 = pneg %p39
    %p46 = scmp.eq.s32.totalorder %s9, 1
    %p47 = por %p45, %p46
    %p48 = scmp.ne.s32.totalorder %s40, %s43
    %p49 = scmp.eq.s32.totalorder %s9, 0
    %p50 = por %p48, %p49
    %p51 = scmp.ne.s32.totalorder %s40, %s43
    %p52 = scmp.eq.s32.totalorder %s14, 1
    %p53 = por %p51, %p52
    %p54 = scmp.ne.s32.totalorder %s43, %s44
    %p55 = scmp.eq.s32.totalorder %s14, 0
    %p56 = por %p54, %p55
    %p57 = scmp.ne.s32.totalorder %s43, %s44
    %p58 = scmp.eq.s32.totalorder %s15, 1
    %p59 = por %p57, %p58
    %p61 = scmp.ne.s32.totalorder %s44, %s60
    %p62 = scmp.eq.s32.totalorder %s15, 0
    %p63 = por %p61, %p62
    %s64 = ssub.s32 %s16, %s35
    %s65 = ssub.s32 %s18, %s27
    %s66 = sor.u32 %s64, %s65
    %p67 = scmp.eq.s32.totalorder %s66, 0
    %s69 = sadd.s32 %s68, 1
    %s70 = scalar_select %p67, %s68, %s69
    %p73 = pneg %p67
    %p74 = scmp.eq.s32.totalorder %s9, 1
    %p75 = por %p73, %p74
    %p76 = scmp.ne.s32.totalorder %s68, %s71
    %p77 = scmp.eq.s32.totalorder %s9, 0
    %p78 = por %p76, %p77
    %p79 = scmp.ne.s32.totalorder %s68, %s71
    %p80 = scmp.eq.s32.totalorder %s14, 1
    %p81 = por %p79, %p80
    %p82 = scmp.ne.s32.totalorder %s71, %s72
    %p83 = scmp.eq.s32.totalorder %s14, 0
    %p84 = por %p82, %p83
    %p85 = scmp.ne.s32.totalorder %s71, %s72
    %p86 = scmp.eq.s32.totalorder %s15, 1
    %p87 = por %p85, %p86
    %p89 = scmp.ne.s32.totalorder %s72, %s88
    %p90 = scmp.eq.s32.totalorder %s15, 0
    %p91 = por %p89, %p90
    %s92 = ssub.s32 %s16, %s35
    %s93 = ssub.s32 %s18, %s27
    %s94 = sor.u32 %s92, %s93
    %p95 = scmp.eq.s32.totalorder %s94, 0
    %s97 = sadd.s32 %s96, 1
    %s98 = scalar_select %p95, %s96, %s97
    %p101 = pneg %p95
    %p102 = scmp.eq.s32.totalorder %s9, 1
    %p103 = por %p101, %p102
    %p104 = scmp.ne.s32.totalorder %s96, %s99
    %p105 = scmp.eq.s32.totalorder %s9, 0
    %p106 = por %p104, %p105
    %p107 = scmp.ne.s32.totalorder %s96, %s99
    %p108 = scmp.eq.s32.totalorder %s14, 1
    %p109 = por %p107, %p108
    %p110 = scmp.ne.s32.totalorder %s99, %s100
    %p111 = scmp.eq.s32.totalorder %s14, 0
    %p112 = por %p110, %p111
    %p113 = scmp.ne.s32.totalorder %s99, %s100
    %p114 = scmp.eq.s32.totalorder %s15, 1
    %p115 = por %p113, %p114
    %p117 = scmp.ne.s32.totalorder %s100, %s116
    %p118 = scmp.eq.s32.totalorder %s15, 0
    %p119 = por %p117, %p118
    %s120 = ssub.s32 %s16, %s35
    %s121 = ssub.s32 %s17, %s31
    %s122 = sor.u32 %s120, %s121
    %p123 = scmp.eq.s32.totalorder %s122, 0
    %s125 = sadd.s32 %s124, 1
    %s126 = scalar_select %p123, %s124, %s125
    %p129 = pneg %p123
    %p130 = scmp.eq.s32.totalorder %s9, 1
    %p131 = por %p129, %p130
    %p132 = scmp.ne.s32.totalorder %s124, %s127
    %p133 = scmp.eq.s32.totalorder %s9, 0
    %p134 = por %p132, %p133
    %p135 = scmp.ne.s32.totalorder %s124, %s127
    %p136 = scmp.eq.s32.totalorder %s14, 1
    %p137 = por %p135, %p136
    %p138 = scmp.ne.s32.totalorder %s127, %s128
    %p139 = scmp.eq.s32.totalorder %s14, 0
    %p140 = por %p138, %p139
    %p141 = scmp.ne.s32.totalorder %s127, %s128
    %p142 = scmp.eq.s32.totalorder %s15, 1
    %p143 = por %p141, %p142
    %p145 = scmp.ne.s32.totalorder %s128, %s144
    %p146 = scmp.eq.s32.totalorder %s15, 0
    %p147 = por %p145, %p146
    %p148 = scmp.le.s32.totalorder 1, %s9
    %p149 = scmp.lt.s32.totalorder %s9, 3
    %p150 = pnand %p148, %p149
    %p151 = pneg %p150
    // Predicated region
    $region9: #{mh_attention.3} parent=5 // pred_check
      _
    $region10: #{mh_attention.3} parent=5 // pred_check_branch
      %153 = sbr.rel (%p150) target = $region12
    $region11: #{mh_attention.3} parent=5 // pred_region
      %s154 = ssub.s32 %s9, 1
    $region12: #{mh_attention.3} parent=5 // pred_fallthru
      _
    %p155 = scmp.lt.s32.totalorder %s9, 2
    // Predicated region
    $region13: #{mh_attention.3} parent=5 // pred_check
      %p156 = pneg %p155
    $region14: #{mh_attention.3} parent=5 // pred_check_branch
      %158 = sbr.rel (%p156) target = $region16
    $region15: #{mh_attention.3} parent=5 // pred_region
      // Predicated region
      $region17: #{mh_attention.3} parent=15 // pred_check
        %p159 = pneg %p50
      $region18: #{mh_attention.3} parent=15 // pred_check_branch
        %161 = sbr.rel (%p159) target = $region20
      $region19: #{mh_attention.3} parent=15 // pred_region
        %s162 = smul.u32 16, %s17
        %p163 = scmp.lt.s32.totalorder %s16, 1
        %s164 = scalar_select %p163, %s16, 1
        %p165 = scmp.lt.s32.totalorder %s162, 15
        %s166 = scalar_select %p165, %s162, 15
        %s167 = smul.addr %s164, 16
        %s168 = sadd.s32 %s166, %s167
        %s169 = smul.addr %s168, 8
        %s170 = scalar_lea.vmem %s0, %s169
        %s171 = smul.u32 16, %s17
      $region20: #{mh_attention.3} parent=15 // pred_fallthru
        _
      // Predicated region
      $region21: #{mh_attention.3} parent=15 // pred_check
        %p172 = pneg %p78
      $region22: #{mh_attention.3} parent=15 // pred_check_branch
        %174 = sbr.rel (%p172) target = $region24
      $region23: #{mh_attention.3} parent=15 // pred_region
        %s175 = smul.u32 16, %s18
        %p176 = scmp.lt.s32.totalorder %s16, 1
        %s177 = scalar_select %p176, %s16, 1
        %p178 = scmp.lt.s32.totalorder %s175, 15
        %s179 = scalar_select %p178, %s175, 15
        %s180 = smul.addr %s177, 16
        %s181 = sadd.s32 %s179, %s180
        %s182 = smul.addr %s181, 8
        %s183 = scalar_lea.vmem %s1, %s182
        %s184 = smul.u32 16, %s18
      $region24: #{mh_attention.3} parent=15 // pred_fallthru
        _
      // Predicated region
      $region25: #{mh_attention.3} parent=15 // pred_check
        %p185 = pneg %p106
      $region26: #{mh_attention.3} parent=15 // pred_check_branch
        %187 = sbr.rel (%p185) target = $region28
      $region27: #{mh_attention.3} parent=15 // pred_region
        %s188 = smul.u32 16, %s18
        %p189 = scmp.lt.s32.totalorder %s16, 1
        %s190 = scalar_select %p189, %s16, 1
        %p191 = scmp.lt.s32.totalorder %s188, 15
        %s192 = scalar_select %p191, %s188, 15
        %s193 = smul.addr %s190, 16
        %s194 = sadd.s32 %s192, %s193
        %s195 = smul.addr %s194, 8
        %s196 = scalar_lea.vmem %s2, %s195
        %s197 = smul.u32 16, %s18
      $region28: #{mh_attention.3} parent=15 // pred_fallthru
        _
    $region16: #{mh_attention.3} parent=5 // pred_fallthru
      _
    %p198 = scmp.le.s32.totalorder 1, %s9
    %p199 = scmp.lt.s32.totalorder %s9, 3
    %p200 = pnand %p198, %p199
    %p201 = pneg %p200
    // Predicated region
    $region29: #{mh_attention.3} parent=5 // pred_check
      _
    $region30: #{mh_attention.3} parent=5 // pred_check_branch
      %203 = sbr.rel (%p200) target = $region32
    $region31: #{mh_attention.3} parent=5 // pred_region
      %s204 = ssub.s32 %s9, 1
      %s205 = smul.u32 16, %s20
      %p206 = scmp.lt.s32.totalorder %s19, 1
      %s207 = scalar_select %p206, %s19, 1
      %p208 = scmp.lt.s32.totalorder %s205, 15
      %s209 = scalar_select %p208, %s205, 15
      %s210 = smul.addr %s207, 16
      %s211 = sadd.s32 %s209, %s210
      %s212 = smul.addr %s211, 8
      %s213 = scalar_lea.vmem %s0, %s212
      %p214 = pneg %p56
      %p215 = pneg %p53
      %s216 = smul.u32 16, %s21
      %p217 = scmp.lt.s32.totalorder %s19, 1
      %s218 = scalar_select %p217, %s19, 1
      %p219 = scmp.lt.s32.totalorder %s216, 15
      %s220 = scalar_select %p219, %s216, 15
      %s221 = smul.addr %s218, 16
      %s222 = sadd.s32 %s220, %s221
      %s223 = smul.addr %s222, 8
      %s224 = scalar_lea.vmem %s1, %s223
      %p225 = pneg %p84
      %p226 = pneg %p81
      %s227 = smul.u32 16, %s21
      %p228 = scmp.lt.s32.totalorder %s19, 1
      %s229 = scalar_select %p228, %s19, 1
      %p230 = scmp.lt.s32.totalorder %s227, 15
      %s231 = scalar_select %p230, %s227, 15
      %s232 = smul.addr %s229, 16
      %s233 = sadd.s32 %s231, %s232
      %s234 = smul.addr %s233, 8
      %s235 = scalar_lea.vmem %s2, %s234
      %p236 = pneg %p112
      %p237 = pneg %p109
      %p238 = pneg %p140
      %p239 = pneg %p137
      %s240 = smul.u32 16, %s20
      %p241 = scmp.lt.s32.totalorder %s19, 1
      %s242 = scalar_select %p241, %s19, 1
      %p243 = scmp.lt.s32.totalorder %s240, 15
      %s244 = scalar_select %p243, %s240, 15
      %s245 = smul.addr %s242, 16
      %s246 = sadd.s32 %s244, %s245
      %s247 = smul.addr %s246, 8
      %s248 = scalar_lea.vmem %s3, %s247
      %s249 = smul.u32 16, %s20
      %p250 = scmp.lt.s32.totalorder %s19, 1
      %s251 = scalar_select %p250, %s19, 1
      %p252 = scmp.lt.s32.totalorder %s249, 15
      %s253 = scalar_select %p252, %s249, 15
      %s254 = smul.addr %s251, 16
      %s255 = sadd.s32 %s253, %s254
      %s256 = smul.addr %s255, 8
      %s257 = scalar_lea.vmem %s0, %s256
      %s258 = smul.u32 16, %s20
      %s259 = smul.u32 16, %s21
      %p260 = scmp.lt.s32.totalorder %s19, 1
      %s261 = scalar_select %p260, %s19, 1
      %p262 = scmp.lt.s32.totalorder %s259, 15
      %s263 = scalar_select %p262, %s259, 15
      %s264 = smul.addr %s261, 16
      %s265 = sadd.s32 %s263, %s264
      %s266 = smul.addr %s265, 8
      %s267 = scalar_lea.vmem %s1, %s266
      %s268 = smul.u32 16, %s21
      %s269 = smul.u32 16, %s21
      %p270 = scmp.lt.s32.totalorder %s19, 1
      %s271 = scalar_select %p270, %s19, 1
      %p272 = scmp.lt.s32.totalorder %s269, 15
      %s273 = scalar_select %p272, %s269, 15
      %s274 = smul.addr %s271, 16
      %s275 = sadd.s32 %s273, %s274
      %s276 = smul.addr %s275, 8
      %s277 = scalar_lea.vmem %s2, %s276
      %s278 = smul.u32 16, %s21
      %s279 = smul.u32 16, %s20
      %p280 = scmp.lt.s32.totalorder %s19, 1
      %s281 = scalar_select %p280, %s19, 1
      %p282 = scmp.lt.s32.totalorder %s279, 15
      %s283 = scalar_select %p282, %s279, 15
      %s284 = smul.addr %s281, 16
      %s285 = sadd.s32 %s283, %s284
      %s286 = smul.addr %s285, 8
      %s287 = scalar_lea.vmem %s3, %s286
      %s288 = smul.u32 16, %s20
      %p289 = scmp.eq.s32.totalorder %s21, 0
      // Predicated region
      $region33: #{mh_attention.3} parent=31 // pred_check
        %p290 = pneg %p289
      $region34: #{mh_attention.3} parent=31 // pred_check_branch
        %292 = sbr.rel (%p290) target = $region36
      $region35: #{mh_attention.3} parent=31 // pred_region
        %vm293 = vcmask 7168
        %294 = vst.msk [vmem:[#allocation2] sm:$0xff] %vm293, -inf
        %295 = vst.msk [vmem:[#allocation2 + $0x8] sm:$0xff] %vm293, -inf
        %296 = vst.msk [vmem:[#allocation2 + $0x10] sm:$0xff] %vm293, -inf
        %297 = vst.msk [vmem:[#allocation2 + $0x18] sm:$0xff] %vm293, -inf
        %298 = vst.msk [vmem:[#allocation2 + $0x20] sm:$0xff] %vm293, -inf
        %299 = vst.msk [vmem:[#allocation2 + $0x28] sm:$0xff] %vm293, -inf
        %300 = vst.msk [vmem:[#allocation2 + $0x30] sm:$0xff] %vm293, -inf
        %301 = vst.msk [vmem:[#allocation2 + $0x38] sm:$0xff] %vm293, -inf
        %302 = vst.msk [vmem:[#allocation2 + $0x40] sm:$0xff] %vm293, -inf
        %303 = vst.msk [vmem:[#allocation2 + $0x48] sm:$0xff] %vm293, -inf
        %304 = vst.msk [vmem:[#allocation2 + $0x50] sm:$0xff] %vm293, -inf
        %305 = vst.msk [vmem:[#allocation2 + $0x58] sm:$0xff] %vm293, -inf
        %306 = vst.msk [vmem:[#allocation2 + $0x60] sm:$0xff] %vm293, -inf
        %307 = vst.msk [vmem:[#allocation2 + $0x68] sm:$0xff] %vm293, -inf
        %308 = vst.msk [vmem:[#allocation2 + $0x70] sm:$0xff] %vm293, -inf
        %309 = vst.msk [vmem:[#allocation2 + $0x78] sm:$0xff] %vm293, -inf
        %310 = vst.msk [vmem:[#allocation3] sm:$0xff] %vm293, 0.0
        %311 = vst.msk [vmem:[#allocation3 + $0x8] sm:$0xff] %vm293, 0.0
        %312 = vst.msk [vmem:[#allocation3 + $0x10] sm:$0xff] %vm293, 0.0
        %313 = vst.msk [vmem:[#allocation3 + $0x18] sm:$0xff] %vm293, 0.0
        %314 = vst.msk [vmem:[#allocation3 + $0x20] sm:$0xff] %vm293, 0.0
        %315 = vst.msk [vmem:[#allocation3 + $0x28] sm:$0xff] %vm293, 0.0
        %316 = vst.msk [vmem:[#allocation3 + $0x30] sm:$0xff] %vm293, 0.0
        %317 = vst.msk [vmem:[#allocation3 + $0x38] sm:$0xff] %vm293, 0.0
        %318 = vst.msk [vmem:[#allocation3 + $0x40] sm:$0xff] %vm293, 0.0
        %319 = vst.msk [vmem:[#allocation3 + $0x48] sm:$0xff] %vm293, 0.0
        %320 = vst.msk [vmem:[#allocation3 + $0x50] sm:$0xff] %vm293, 0.0
        %321 = vst.msk [vmem:[#allocation3 + $0x58] sm:$0xff] %vm293, 0.0
        %322 = vst.msk [vmem:[#allocation3 + $0x60] sm:$0xff] %vm293, 0.0
        %323 = vst.msk [vmem:[#allocation3 + $0x68] sm:$0xff] %vm293, 0.0
        %324 = vst.msk [vmem:[#allocation3 + $0x70] sm:$0xff] %vm293, 0.0
        %325 = vst.msk [vmem:[#allocation3 + $0x78] sm:$0xff] %vm293, 0.0
        %326 = vst [vmem:[#allocation4] sm:$0xff] 0.0
        %327 = vst [vmem:[#allocation4 + $0x8] sm:$0xff] 0.0
        %328 = vst [vmem:[#allocation4 + $0x10] sm:$0xff] 0.0
        %329 = vst [vmem:[#allocation4 + $0x18] sm:$0xff] 0.0
        %330 = vst [vmem:[#allocation4 + $0x20] sm:$0xff] 0.0
        %331 = vst [vmem:[#allocation4 + $0x28] sm:$0xff] 0.0
        %332 = vst [vmem:[#allocation4 + $0x30] sm:$0xff] 0.0
        %333 = vst [vmem:[#allocation4 + $0x38] sm:$0xff] 0.0
        %334 = vst [vmem:[#allocation4 + $0x40] sm:$0xff] 0.0
        %335 = vst [vmem:[#allocation4 + $0x48] sm:$0xff] 0.0
        %336 = vst [vmem:[#allocation4 + $0x50] sm:$0xff] 0.0
        %337 = vst [vmem:[#allocation4 + $0x58] sm:$0xff] 0.0
        %338 = vst [vmem:[#allocation4 + $0x60] sm:$0xff] 0.0
        %339 = vst [vmem:[#allocation4 + $0x68] sm:$0xff] 0.0
        %340 = vst [vmem:[#allocation4 + $0x70] sm:$0xff] 0.0
        %341 = vst [vmem:[#allocation4 + $0x78] sm:$0xff] 0.0
      $region36: #{mh_attention.3} parent=31 // pred_fallthru
        _
      %v342 = vld [vmem:[%s257] sm:$0xff]
      %v343 = vld [vmem:[%s257 + $0x8] sm:$0xff]
      %v344 = vld [vmem:[%s257 + $0x10] sm:$0xff]
      %v345 = vld [vmem:[%s257 + $0x18] sm:$0xff]
      %v346 = vld [vmem:[%s257 + $0x20] sm:$0xff]
      %v347 = vld [vmem:[%s257 + $0x28] sm:$0xff]
      %v348 = vld [vmem:[%s257 + $0x30] sm:$0xff]
      %v349 = vld [vmem:[%s257 + $0x38] sm:$0xff]
      %v350 = vld [vmem:[%s257 + $0x40] sm:$0xff]
      %v351 = vld [vmem:[%s257 + $0x48] sm:$0xff]
      %v352 = vld [vmem:[%s257 + $0x50] sm:$0xff]
      %v353 = vld [vmem:[%s257 + $0x58] sm:$0xff]
      %v354 = vld [vmem:[%s257 + $0x60] sm:$0xff]
      %v355 = vld [vmem:[%s257 + $0x68] sm:$0xff]
      %v356 = vld [vmem:[%s257 + $0x70] sm:$0xff]
      %v357 = vld [vmem:[%s257 + $0x78] sm:$0xff]
      %v358 = vld [vmem:[%s267] sm:$0xff]
      %v359 = vld [vmem:[%s267 + $0x8] sm:$0xff]
      %v360 = vld [vmem:[%s267 + $0x10] sm:$0xff]
      %v361 = vld [vmem:[%s267 + $0x18] sm:$0xff]
      %v362 = vld [vmem:[%s267 + $0x20] sm:$0xff]
      %v363 = vld [vmem:[%s267 + $0x28] sm:$0xff]
      %v364 = vld [vmem:[%s267 + $0x30] sm:$0xff]
      %v365 = vld [vmem:[%s267 + $0x38] sm:$0xff]
      %v366 = vld [vmem:[%s267 + $0x40] sm:$0xff]
      %v367 = vld [vmem:[%s267 + $0x48] sm:$0xff]
      %v368 = vld [vmem:[%s267 + $0x50] sm:$0xff]
      %v369 = vld [vmem:[%s267 + $0x58] sm:$0xff]
      %v370 = vld [vmem:[%s267 + $0x60] sm:$0xff]
      %v371 = vld [vmem:[%s267 + $0x68] sm:$0xff]
      %v372 = vld [vmem:[%s267 + $0x70] sm:$0xff]
      %v373 = vld [vmem:[%s267 + $0x78] sm:$0xff]
      %374 = vmatpush.xpose.msra.mxu0 %v373
      %375 = vmatpush.xpose.msra.mxu0 %v372
      %376 = vmatpush.xpose.msra.mxu0 %v371
      %377 = vmatpush.xpose.msra.mxu0 %v370
      %378 = vmatpush.xpose.msra.mxu0 %v369
      %379 = vmatpush.xpose.msra.mxu0 %v368
      %380 = vmatpush.xpose.msra.mxu0 %v367
      %381 = vmatpush.xpose.msra.mxu0 %v366
      %382 = vmatpush.xpose.msra.mxu0 %v365
      %383 = vmatpush.xpose.msra.mxu0 %v364
      %384 = vmatpush.xpose.msra.mxu0 %v363
      %385 = vmatpush.xpose.msra.mxu0 %v362
      %386 = vmatpush.xpose.msra.mxu0 %v361
      %387 = vmatpush.xpose.msra.mxu0 %v360
      %388 = vmatpush.xpose.msra.mxu0 %v359
      %389 = vmatpush.xpose.msra.mxu0 %v358
      %390 = vmatmul.f32.gmra.mxu0 %v342
      %v391 = vpop.f32.mrf.mxu0
      %v392 = vadd.f32 0.0, %v391
      %393 = vmatmul.f32.gmra.mxu0 %v343
      %v394 = vpop.f32.mrf.mxu0
      %v395 = vadd.f32 0.0, %v394
      %396 = vmatmul.f32.gmra.mxu0 %v344
      %v397 = vpop.f32.mrf.mxu0
      %v398 = vadd.f32 0.0, %v397
      %399 = vmatmul.f32.gmra.mxu0 %v345
      %v400 = vpop.f32.mrf.mxu0
      %v401 = vadd.f32 0.0, %v400
      %402 = vmatmul.f32.gmra.mxu0 %v346
      %v403 = vpop.f32.mrf.mxu0
      %v404 = vadd.f32 0.0, %v403
      %405 = vmatmul.f32.gmra.mxu0 %v347
      %v406 = vpop.f32.mrf.mxu0
      %v407 = vadd.f32 0.0, %v406
      %408 = vmatmul.f32.gmra.mxu0 %v348
      %v409 = vpop.f32.mrf.mxu0
      %v410 = vadd.f32 0.0, %v409
      %411 = vmatmul.f32.gmra.mxu0 %v349
      %v412 = vpop.f32.mrf.mxu0
      %v413 = vadd.f32 0.0, %v412
      %414 = vmatmul.f32.gmra.mxu0 %v350
      %v415 = vpop.f32.mrf.mxu0
      %v416 = vadd.f32 0.0, %v415
      %417 = vmatmul.f32.gmra.mxu0 %v351
      %v418 = vpop.f32.mrf.mxu0
      %v419 = vadd.f32 0.0, %v418
      %420 = vmatmul.f32.gmra.mxu0 %v352
      %v421 = vpop.f32.mrf.mxu0
      %v422 = vadd.f32 0.0, %v421
      %423 = vmatmul.f32.gmra.mxu0 %v353
      %v424 = vpop.f32.mrf.mxu0
      %v425 = vadd.f32 0.0, %v424
      %426 = vmatmul.f32.gmra.mxu0 %v354
      %v427 = vpop.f32.mrf.mxu0
      %v428 = vadd.f32 0.0, %v427
      %429 = vmatmul.f32.gmra.mxu0 %v355
      %v430 = vpop.f32.mrf.mxu0
      %v431 = vadd.f32 0.0, %v430
      %432 = vmatmul.f32.gmra.mxu0 %v356
      %v433 = vpop.f32.mrf.mxu0
      %v434 = vadd.f32 0.0, %v433
      %435 = vmatmul.f32.gmra.mxu0 %v357
      %v436 = vpop.f32.mrf.mxu0
      %v437 = vadd.f32 0.0, %v436
      %438 = vdwg.mxu0
      %s439 = smul.u32 %s21, 128
      %v440 = vlaneseq
      %v441 = vand.u32 %v440, 127
      %v442 = vstv %s439
      %v443 = vadd.s32 %v442, %v441
      %vm444 = vcmp.lt.s32.totalorder %v443, 8
      %v445 = vsel %vm444, %v392, -1e+30
      %v446 = vsel %vm444, %v395, -1e+30
      %v447 = vsel %vm444, %v398, -1e+30
      %v448 = vsel %vm444, %v401, -1e+30
      %v449 = vsel %vm444, %v404, -1e+30
      %v450 = vsel %vm444, %v407, -1e+30
      %v451 = vsel %vm444, %v410, -1e+30
      %v452 = vsel %vm444, %v413, -1e+30
      %v453 = vsel %vm444, %v416, -1e+30
      %v454 = vsel %vm444, %v419, -1e+30
      %v455 = vsel %vm444, %v422, -1e+30
      %v456 = vsel %vm444, %v425, -1e+30
      %v457 = vsel %vm444, %v428, -1e+30
      %v458 = vsel %vm444, %v431, -1e+30
      %v459 = vsel %vm444, %v434, -1e+30
      %v460 = vsel %vm444, %v437, -1e+30
      %v461 = vld [vmem:[#allocation2] sm:$0xff]
      %v462 = vld [vmem:[#allocation2 + $0x8] sm:$0xff]
      %v463 = vld [vmem:[#allocation2 + $0x10] sm:$0xff]
      %v464 = vld [vmem:[#allocation2 + $0x18] sm:$0xff]
      %v465 = vld [vmem:[#allocation2 + $0x20] sm:$0xff]
      %v466 = vld [vmem:[#allocation2 + $0x28] sm:$0xff]
      %v467 = vld [vmem:[#allocation2 + $0x30] sm:$0xff]
      %v468 = vld [vmem:[#allocation2 + $0x38] sm:$0xff]
      %v469 = vld [vmem:[#allocation2 + $0x40] sm:$0xff]
      %v470 = vld [vmem:[#allocation2 + $0x48] sm:$0xff]
      %v471 = vld [vmem:[#allocation2 + $0x50] sm:$0xff]
      %v472 = vld [vmem:[#allocation2 + $0x58] sm:$0xff]
      %v473 = vld [vmem:[#allocation2 + $0x60] sm:$0xff]
      %v474 = vld [vmem:[#allocation2 + $0x68] sm:$0xff]
      %v475 = vld [vmem:[#allocation2 + $0x70] sm:$0xff]
      %v476 = vld [vmem:[#allocation2 + $0x78] sm:$0xff]
      %477 = vmax.xlane.f32.xlu0 %v445
      %v478 = vpop.xlane.xlu0 %477
      %479 = vmax.xlane.f32.xlu0 %v446
      %v480 = vpop.xlane.xlu0 %479
      %481 = vmax.xlane.f32.xlu0 %v447
      %v482 = vpop.xlane.xlu0 %481
      %483 = vmax.xlane.f32.xlu0 %v448
      %v484 = vpop.xlane.xlu0 %483
      %485 = vmax.xlane.f32.xlu0 %v449
      %v486 = vpop.xlane.xlu0 %485
      %487 = vmax.xlane.f32.xlu0 %v450
      %v488 = vpop.xlane.xlu0 %487
      %489 = vmax.xlane.f32.xlu0 %v451
      %v490 = vpop.xlane.xlu0 %489
      %491 = vmax.xlane.f32.xlu0 %v452
      %v492 = vpop.xlane.xlu0 %491
      %493 = vmax.xlane.f32.xlu0 %v453
      %v494 = vpop.xlane.xlu0 %493
      %495 = vmax.xlane.f32.xlu0 %v454
      %v496 = vpop.xlane.xlu0 %495
      %497 = vmax.xlane.f32.xlu0 %v455
      %v498 = vpop.xlane.xlu0 %497
      %499 = vmax.xlane.f32.xlu0 %v456
      %v500 = vpop.xlane.xlu0 %499
      %501 = vmax.xlane.f32.xlu0 %v457
      %v502 = vpop.xlane.xlu0 %501
      %503 = vmax.xlane.f32.xlu0 %v458
      %v504 = vpop.xlane.xlu0 %503
      %505 = vmax.xlane.f32.xlu0 %v459
      %v506 = vpop.xlane.xlu0 %505
      %507 = vmax.xlane.f32.xlu0 %v460
      %v508 = vpop.xlane.xlu0 %507
      %v509 = vmax.f32 %v461, %v478
      %v510 = vmax.f32 %v462, %v480
      %v511 = vmax.f32 %v463, %v482
      %v512 = vmax.f32 %v464, %v484
      %v513 = vmax.f32 %v465, %v486
      %v514 = vmax.f32 %v466, %v488
      %v515 = vmax.f32 %v467, %v490
      %v516 = vmax.f32 %v468, %v492
      %v517 = vmax.f32 %v469, %v494
      %v518 = vmax.f32 %v470, %v496
      %v519 = vmax.f32 %v471, %v498
      %v520 = vmax.f32 %v472, %v500
      %v521 = vmax.f32 %v473, %v502
      %v522 = vmax.f32 %v474, %v504
      %v523 = vmax.f32 %v475, %v506
      %v524 = vmax.f32 %v476, %v508
      %v525 = vsub.f32 %v461, %v509
      %v526 = vsub.f32 %v462, %v510
      %v527 = vsub.f32 %v463, %v511
      %v528 = vsub.f32 %v464, %v512
      %v529 = vsub.f32 %v465, %v513
      %v530 = vsub.f32 %v466, %v514
      %v531 = vsub.f32 %v467, %v515
      %v532 = vsub.f32 %v468, %v516
      %v533 = vsub.f32 %v469, %v517
      %v534 = vsub.f32 %v470, %v518
      %v535 = vsub.f32 %v471, %v519
      %v536 = vsub.f32 %v472, %v520
      %v537 = vsub.f32 %v473, %v521
      %v538 = vsub.f32 %v474, %v522
      %v539 = vsub.f32 %v475, %v523
      %v540 = vsub.f32 %v476, %v524
      %v541 = vmul.f32 %v525, 1.442695
      %v542 = vpow.pop %v541
      %v543 = vmul.f32 %v526, 1.442695
      %v544 = vpow.pop %v543
      %v545 = vmul.f32 %v527, 1.442695
      %v546 = vpow.pop %v545
      %v547 = vmul.f32 %v528, 1.442695
      %v548 = vpow.pop %v547
      %v549 = vmul.f32 %v529, 1.442695
      %v550 = vpow.pop %v549
      %v551 = vmul.f32 %v530, 1.442695
      %v552 = vpow.pop %v551
      %v553 = vmul.f32 %v531, 1.442695
      %v554 = vpow.pop %v553
      %v555 = vmul.f32 %v532, 1.442695
      %v556 = vpow.pop %v555
      %v557 = vmul.f32 %v533, 1.442695
      %v558 = vpow.pop %v557
      %v559 = vmul.f32 %v534, 1.442695
      %v560 = vpow.pop %v559
      %v561 = vmul.f32 %v535, 1.442695
      %v562 = vpow.pop %v561
      %v563 = vmul.f32 %v536, 1.442695
      %v564 = vpow.pop %v563
      %v565 = vmul.f32 %v537, 1.442695
      %v566 = vpow.pop %v565
      %v567 = vmul.f32 %v538, 1.442695
      %v568 = vpow.pop %v567
      %v569 = vmul.f32 %v539, 1.442695
      %v570 = vpow.pop %v569
      %v571 = vmul.f32 %v540, 1.442695
      %v572 = vpow.pop %v571
      %574 = vset.pattern.permute.xlu0 0
      %575 = vperm.xlu0 %574, %v509
      %v576 = vpop.permute.xlu0 %575
      %579 = vset.pattern.permute.xlu0 0
      %580 = vperm.xlu0 %579, %v510
      %v581 = vpop.permute.xlu0 %580
      %584 = vset.pattern.permute.xlu0 0
      %585 = vperm.xlu0 %584, %v511
      %v586 = vpop.permute.xlu0 %585
      %589 = vset.pattern.permute.xlu0 0
      %590 = vperm.xlu0 %589, %v512
      %v591 = vpop.permute.xlu0 %590
      %594 = vset.pattern.permute.xlu0 0
      %595 = vperm.xlu0 %594, %v513
      %v596 = vpop.permute.xlu0 %595
      %599 = vset.pattern.permute.xlu0 0
      %600 = vperm.xlu0 %599, %v514
      %v601 = vpop.permute.xlu0 %600
      %604 = vset.pattern.permute.xlu0 0
      %605 = vperm.xlu0 %604, %v515
      %v606 = vpop.permute.xlu0 %605
      %609 = vset.pattern.permute.xlu0 0
      %610 = vperm.xlu0 %609, %v516
      %v611 = vpop.permute.xlu0 %610
      %614 = vset.pattern.permute.xlu0 0
      %615 = vperm.xlu0 %614, %v517
      %v616 = vpop.permute.xlu0 %615
      %619 = vset.pattern.permute.xlu0 0
      %620 = vperm.xlu0 %619, %v518
      %v621 = vpop.permute.xlu0 %620
      %624 = vset.pattern.permute.xlu0 0
      %625 = vperm.xlu0 %624, %v519
      %v626 = vpop.permute.xlu0 %625
      %629 = vset.pattern.permute.xlu0 0
      %630 = vperm.xlu0 %629, %v520
      %v631 = vpop.permute.xlu0 %630
      %634 = vset.pattern.permute.xlu0 0
      %635 = vperm.xlu0 %634, %v521
      %v636 = vpop.permute.xlu0 %635
      %639 = vset.pattern.permute.xlu0 0
      %640 = vperm.xlu0 %639, %v522
      %v641 = vpop.permute.xlu0 %640
      %644 = vset.pattern.permute.xlu0 0
      %645 = vperm.xlu0 %644, %v523
      %v646 = vpop.permute.xlu0 %645
      %649 = vset.pattern.permute.xlu0 0
      %650 = vperm.xlu0 %649, %v524
      %v651 = vpop.permute.xlu0 %650
      %v653 = vsub.f32 %v445, %v576
      %v654 = vsub.f32 %v446, %v581
      %v655 = vsub.f32 %v447, %v586
      %v656 = vsub.f32 %v448, %v591
      %v657 = vsub.f32 %v449, %v596
      %v658 = vsub.f32 %v450, %v601
      %v659 = vsub.f32 %v451, %v606
      %v660 = vsub.f32 %v452, %v611
      %v661 = vsub.f32 %v453, %v616
      %v662 = vsub.f32 %v454, %v621
      %v663 = vsub.f32 %v455, %v626
      %v664 = vsub.f32 %v456, %v631
      %v665 = vsub.f32 %v457, %v636
      %v666 = vsub.f32 %v458, %v641
      %v667 = vsub.f32 %v459, %v646
      %v668 = vsub.f32 %v460, %v651
      %v669 = vmul.f32 %v653, 1.442695
      %v670 = vpow.pop %v669
      %v671 = vmul.f32 %v654, 1.442695
      %v672 = vpow.pop %v671
      %v673 = vmul.f32 %v655, 1.442695
      %v674 = vpow.pop %v673
      %v675 = vmul.f32 %v656, 1.442695
      %v676 = vpow.pop %v675
      %v677 = vmul.f32 %v657, 1.442695
      %v678 = vpow.pop %v677
      %v679 = vmul.f32 %v658, 1.442695
      %v680 = vpow.pop %v679
      %v681 = vmul.f32 %v659, 1.442695
      %v682 = vpow.pop %v681
      %v683 = vmul.f32 %v660, 1.442695
      %v684 = vpow.pop %v683
      %v685 = vmul.f32 %v661, 1.442695
      %v686 = vpow.pop %v685
      %v687 = vmul.f32 %v662, 1.442695
      %v688 = vpow.pop %v687
      %v689 = vmul.f32 %v663, 1.442695
      %v690 = vpow.pop %v689
      %v691 = vmul.f32 %v664, 1.442695
      %v692 = vpow.pop %v691
      %v693 = vmul.f32 %v665, 1.442695
      %v694 = vpow.pop %v693
      %v695 = vmul.f32 %v666, 1.442695
      %v696 = vpow.pop %v695
      %v697 = vmul.f32 %v667, 1.442695
      %v698 = vpow.pop %v697
      %v699 = vmul.f32 %v668, 1.442695
      %v700 = vpow.pop %v699
      %v701 = vld [vmem:[#allocation3] sm:$0xff]
      %v702 = vld [vmem:[#allocation3 + $0x8] sm:$0xff]
      %v703 = vld [vmem:[#allocation3 + $0x10] sm:$0xff]
      %v704 = vld [vmem:[#allocation3 + $0x18] sm:$0xff]
      %v705 = vld [vmem:[#allocation3 + $0x20] sm:$0xff]
      %v706 = vld [vmem:[#allocation3 + $0x28] sm:$0xff]
      %v707 = vld [vmem:[#allocation3 + $0x30] sm:$0xff]
      %v708 = vld [vmem:[#allocation3 + $0x38] sm:$0xff]
      %v709 = vld [vmem:[#allocation3 + $0x40] sm:$0xff]
      %v710 = vld [vmem:[#allocation3 + $0x48] sm:$0xff]
      %v711 = vld [vmem:[#allocation3 + $0x50] sm:$0xff]
      %v712 = vld [vmem:[#allocation3 + $0x58] sm:$0xff]
      %v713 = vld [vmem:[#allocation3 + $0x60] sm:$0xff]
      %v714 = vld [vmem:[#allocation3 + $0x68] sm:$0xff]
      %v715 = vld [vmem:[#allocation3 + $0x70] sm:$0xff]
      %v716 = vld [vmem:[#allocation3 + $0x78] sm:$0xff]
      %v717 = vmul.f32 %v542, %v701
      %v718 = vmul.f32 %v544, %v702
      %v719 = vmul.f32 %v546, %v703
      %v720 = vmul.f32 %v548, %v704
      %v721 = vmul.f32 %v550, %v705
      %v722 = vmul.f32 %v552, %v706
      %v723 = vmul.f32 %v554, %v707
      %v724 = vmul.f32 %v556, %v708
      %v725 = vmul.f32 %v558, %v709
      %v726 = vmul.f32 %v560, %v710
      %v727 = vmul.f32 %v562, %v711
      %v728 = vmul.f32 %v564, %v712
      %v729 = vmul.f32 %v566, %v713
      %v730 = vmul.f32 %v568, %v714
      %v731 = vmul.f32 %v570, %v715
      %v732 = vmul.f32 %v572, %v716
      %733 = vadd.xlane.f32.xlu0 %v670
      %v734 = vpop.xlane.xlu0 %733
      %735 = vadd.xlane.f32.xlu0 %v672
      %v736 = vpop.xlane.xlu0 %735
      %737 = vadd.xlane.f32.xlu0 %v674
      %v738 = vpop.xlane.xlu0 %737
      %739 = vadd.xlane.f32.xlu0 %v676
      %v740 = vpop.xlane.xlu0 %739
      %741 = vadd.xlane.f32.xlu0 %v678
      %v742 = vpop.xlane.xlu0 %741
      %743 = vadd.xlane.f32.xlu0 %v680
      %v744 = vpop.xlane.xlu0 %743
      %745 = vadd.xlane.f32.xlu0 %v682
      %v746 = vpop.xlane.xlu0 %745
      %747 = vadd.xlane.f32.xlu0 %v684
      %v748 = vpop.xlane.xlu0 %747
      %749 = vadd.xlane.f32.xlu0 %v686
      %v750 = vpop.xlane.xlu0 %749
      %751 = vadd.xlane.f32.xlu0 %v688
      %v752 = vpop.xlane.xlu0 %751
      %753 = vadd.xlane.f32.xlu0 %v690
      %v754 = vpop.xlane.xlu0 %753
      %755 = vadd.xlane.f32.xlu0 %v692
      %v756 = vpop.xlane.xlu0 %755
      %757 = vadd.xlane.f32.xlu0 %v694
      %v758 = vpop.xlane.xlu0 %757
      %759 = vadd.xlane.f32.xlu0 %v696
      %v760 = vpop.xlane.xlu0 %759
      %761 = vadd.xlane.f32.xlu0 %v698
      %v762 = vpop.xlane.xlu0 %761
      %763 = vadd.xlane.f32.xlu0 %v700
      %v764 = vpop.xlane.xlu0 %763
      %v765 = vadd.f32 %v717, %v734
      %v766 = vadd.f32 %v718, %v736
      %v767 = vadd.f32 %v719, %v738
      %v768 = vadd.f32 %v720, %v740
      %v769 = vadd.f32 %v721, %v742
      %v770 = vadd.f32 %v722, %v744
      %v771 = vadd.f32 %v723, %v746
      %v772 = vadd.f32 %v724, %v748
      %v773 = vadd.f32 %v725, %v750
      %v774 = vadd.f32 %v726, %v752
      %v775 = vadd.f32 %v727, %v754
      %v776 = vadd.f32 %v728, %v756
      %v777 = vadd.f32 %v729, %v758
      %v778 = vadd.f32 %v730, %v760
      %v779 = vadd.f32 %v731, %v762
      %v780 = vadd.f32 %v732, %v764
      %vm781 = vcmask 7168
      %782 = vst.msk [vmem:[#allocation3] sm:$0xff] %vm781, %v765
      %783 = vst.msk [vmem:[#allocation3 + $0x8] sm:$0xff] %vm781, %v766
      %784 = vst.msk [vmem:[#allocation3 + $0x10] sm:$0xff] %vm781, %v767
      %785 = vst.msk [vmem:[#allocation3 + $0x18] sm:$0xff] %vm781, %v768
      %786 = vst.msk [vmem:[#allocation3 + $0x20] sm:$0xff] %vm781, %v769
      %787 = vst.msk [vmem:[#allocation3 + $0x28] sm:$0xff] %vm781, %v770
      %788 = vst.msk [vmem:[#allocation3 + $0x30] sm:$0xff] %vm781, %v771
      %789 = vst.msk [vmem:[#allocation3 + $0x38] sm:$0xff] %vm781, %v772
      %790 = vst.msk [vmem:[#allocation3 + $0x40] sm:$0xff] %vm781, %v773
      %791 = vst.msk [vmem:[#allocation3 + $0x48] sm:$0xff] %vm781, %v774
      %792 = vst.msk [vmem:[#allocation3 + $0x50] sm:$0xff] %vm781, %v775
      %793 = vst.msk [vmem:[#allocation3 + $0x58] sm:$0xff] %vm781, %v776
      %794 = vst.msk [vmem:[#allocation3 + $0x60] sm:$0xff] %vm781, %v777
      %795 = vst.msk [vmem:[#allocation3 + $0x68] sm:$0xff] %vm781, %v778
      %796 = vst.msk [vmem:[#allocation3 + $0x70] sm:$0xff] %vm781, %v779
      %797 = vst.msk [vmem:[#allocation3 + $0x78] sm:$0xff] %vm781, %v780
      %v798 = vld [vmem:[#allocation4] sm:$0xff]
      %v799 = vld [vmem:[#allocation4 + $0x8] sm:$0xff]
      %v800 = vld [vmem:[#allocation4 + $0x10] sm:$0xff]
      %v801 = vld [vmem:[#allocation4 + $0x18] sm:$0xff]
      %v802 = vld [vmem:[#allocation4 + $0x20] sm:$0xff]
      %v803 = vld [vmem:[#allocation4 + $0x28] sm:$0xff]
      %v804 = vld [vmem:[#allocation4 + $0x30] sm:$0xff]
      %v805 = vld [vmem:[#allocation4 + $0x38] sm:$0xff]
      %v806 = vld [vmem:[#allocation4 + $0x40] sm:$0xff]
      %v807 = vld [vmem:[#allocation4 + $0x48] sm:$0xff]
      %v808 = vld [vmem:[#allocation4 + $0x50] sm:$0xff]
      %v809 = vld [vmem:[#allocation4 + $0x58] sm:$0xff]
      %v810 = vld [vmem:[#allocation4 + $0x60] sm:$0xff]
      %v811 = vld [vmem:[#allocation4 + $0x68] sm:$0xff]
      %v812 = vld [vmem:[#allocation4 + $0x70] sm:$0xff]
      %v813 = vld [vmem:[#allocation4 + $0x78] sm:$0xff]
      %815 = vset.pattern.permute.xlu0 0
      %816 = vperm.xlu0 %815, %v542
      %v817 = vpop.permute.xlu0 %816
      %820 = vset.pattern.permute.xlu0 0
      %821 = vperm.xlu0 %820, %v544
      %v822 = vpop.permute.xlu0 %821
      %825 = vset.pattern.permute.xlu0 0
      %826 = vperm.xlu0 %825, %v546
      %v827 = vpop.permute.xlu0 %826
      %830 = vset.pattern.permute.xlu0 0
      %831 = vperm.xlu0 %830, %v548
      %v832 = vpop.permute.xlu0 %831
      %835 = vset.pattern.permute.xlu0 0
      %836 = vperm.xlu0 %835, %v550
      %v837 = vpop.permute.xlu0 %836
      %840 = vset.pattern.permute.xlu0 0
      %841 = vperm.xlu0 %840, %v552
      %v842 = vpop.permute.xlu0 %841
      %845 = vset.pattern.permute.xlu0 0
      %846 = vperm.xlu0 %845, %v554
      %v847 = vpop.permute.xlu0 %846
      %850 = vset.pattern.permute.xlu0 0
      %851 = vperm.xlu0 %850, %v556
      %v852 = vpop.permute.xlu0 %851
      %855 = vset.pattern.permute.xlu0 0
      %856 = vperm.xlu0 %855, %v558
      %v857 = vpop.permute.xlu0 %856
      %860 = vset.pattern.permute.xlu0 0
      %861 = vperm.xlu0 %860, %v560
      %v862 = vpop.permute.xlu0 %861
      %865 = vset.pattern.permute.xlu0 0
      %866 = vperm.xlu0 %865, %v562
      %v867 = vpop.permute.xlu0 %866
      %870 = vset.pattern.permute.xlu0 0
      %871 = vperm.xlu0 %870, %v564
      %v872 = vpop.permute.xlu0 %871
      %875 = vset.pattern.permute.xlu0 0
      %876 = vperm.xlu0 %875, %v566
      %v877 = vpop.permute.xlu0 %876
      %880 = vset.pattern.permute.xlu0 0
      %881 = vperm.xlu0 %880, %v568
      %v882 = vpop.permute.xlu0 %881
      %885 = vset.pattern.permute.xlu0 0
      %886 = vperm.xlu0 %885, %v570
      %v887 = vpop.permute.xlu0 %886
      %890 = vset.pattern.permute.xlu0 0
      %891 = vperm.xlu0 %890, %v572
      %v892 = vpop.permute.xlu0 %891
      %v894 = vmul.f32 %v817, %v798
      %v895 = vmul.f32 %v822, %v799
      %v896 = vmul.f32 %v827, %v800
      %v897 = vmul.f32 %v832, %v801
      %v898 = vmul.f32 %v837, %v802
      %v899 = vmul.f32 %v842, %v803
      %v900 = vmul.f32 %v847, %v804
      %v901 = vmul.f32 %v852, %v805
      %v902 = vmul.f32 %v857, %v806
      %v903 = vmul.f32 %v862, %v807
      %v904 = vmul.f32 %v867, %v808
      %v905 = vmul.f32 %v872, %v809
      %v906 = vmul.f32 %v877, %v810
      %v907 = vmul.f32 %v882, %v811
      %v908 = vmul.f32 %v887, %v812
      %v909 = vmul.f32 %v892, %v813
      %v910 = vld [vmem:[%s277] sm:$0xff]
      %v911 = vld [vmem:[%s277 + $0x8] sm:$0xff]
      %v912 = vld [vmem:[%s277 + $0x10] sm:$0xff]
      %v913 = vld [vmem:[%s277 + $0x18] sm:$0xff]
      %v914 = vld [vmem:[%s277 + $0x20] sm:$0xff]
      %v915 = vld [vmem:[%s277 + $0x28] sm:$0xff]
      %v916 = vld [vmem:[%s277 + $0x30] sm:$0xff]
      %v917 = vld [vmem:[%s277 + $0x38] sm:$0xff]
      %v918 = vld [vmem:[%s277 + $0x40] sm:$0xff]
      %v919 = vld [vmem:[%s277 + $0x48] sm:$0xff]
      %v920 = vld [vmem:[%s277 + $0x50] sm:$0xff]
      %v921 = vld [vmem:[%s277 + $0x58] sm:$0xff]
      %v922 = vld [vmem:[%s277 + $0x60] sm:$0xff]
      %v923 = vld [vmem:[%s277 + $0x68] sm:$0xff]
      %v924 = vld [vmem:[%s277 + $0x70] sm:$0xff]
      %v925 = vld [vmem:[%s277 + $0x78] sm:$0xff]
      %926 = vmatpush.msra.mxu0 %v925
      %927 = vmatpush.msra.mxu0 %v924
      %928 = vmatpush.msra.mxu0 %v923
      %929 = vmatpush.msra.mxu0 %v922
      %930 = vmatpush.msra.mxu0 %v921
      %931 = vmatpush.msra.mxu0 %v920
      %932 = vmatpush.msra.mxu0 %v919
      %933 = vmatpush.msra.mxu0 %v918
      %934 = vmatpush.msra.mxu0 %v917
      %935 = vmatpush.msra.mxu0 %v916
      %936 = vmatpush.msra.mxu0 %v915
      %937 = vmatpush.msra.mxu0 %v914
      %938 = vmatpush.msra.mxu0 %v913
      %939 = vmatpush.msra.mxu0 %v912
      %940 = vmatpush.msra.mxu0 %v911
      %941 = vmatpush.msra.mxu0 %v910
      %942 = vmatmul.f32.gmra.mxu0 %v670
      %v943 = vpop.f32.mrf.mxu0
      %v944 = vadd.f32 0.0, %v943
      %945 = vmatmul.f32.gmra.mxu0 %v672
      %v946 = vpop.f32.mrf.mxu0
      %v947 = vadd.f32 0.0, %v946
      %948 = vmatmul.f32.gmra.mxu0 %v674
      %v949 = vpop.f32.mrf.mxu0
      %v950 = vadd.f32 0.0, %v949
      %951 = vmatmul.f32.gmra.mxu0 %v676
      %v952 = vpop.f32.mrf.mxu0
      %v953 = vadd.f32 0.0, %v952
      %954 = vmatmul.f32.gmra.mxu0 %v678
      %v955 = vpop.f32.mrf.mxu0
      %v956 = vadd.f32 0.0, %v955
      %957 = vmatmul.f32.gmra.mxu0 %v680
      %v958 = vpop.f32.mrf.mxu0
      %v959 = vadd.f32 0.0, %v958
      %960 = vmatmul.f32.gmra.mxu0 %v682
      %v961 = vpop.f32.mrf.mxu0
      %v962 = vadd.f32 0.0, %v961
      %963 = vmatmul.f32.gmra.mxu0 %v684
      %v964 = vpop.f32.mrf.mxu0
      %v965 = vadd.f32 0.0, %v964
      %966 = vmatmul.f32.gmra.mxu0 %v686
      %v967 = vpop.f32.mrf.mxu0
      %v968 = vadd.f32 0.0, %v967
      %969 = vmatmul.f32.gmra.mxu0 %v688
      %v970 = vpop.f32.mrf.mxu0
      %v971 = vadd.f32 0.0, %v970
      %972 = vmatmul.f32.gmra.mxu0 %v690
      %v973 = vpop.f32.mrf.mxu0
      %v974 = vadd.f32 0.0, %v973
      %975 = vmatmul.f32.gmra.mxu0 %v692
      %v976 = vpop.f32.mrf.mxu0
      %v977 = vadd.f32 0.0, %v976
      %978 = vmatmul.f32.gmra.mxu0 %v694
      %v979 = vpop.f32.mrf.mxu0
      %v980 = vadd.f32 0.0, %v979
      %981 = vmatmul.f32.gmra.mxu0 %v696
      %v982 = vpop.f32.mrf.mxu0
      %v983 = vadd.f32 0.0, %v982
      %984 = vmatmul.f32.gmra.mxu0 %v698
      %v985 = vpop.f32.mrf.mxu0
      %v986 = vadd.f32 0.0, %v985
      %987 = vmatmul.f32.gmra.mxu0 %v700
      %v988 = vpop.f32.mrf.mxu0
      %v989 = vadd.f32 0.0, %v988
      %990 = vdwg.mxu0
      %v991 = vadd.f32 %v894, %v944
      %v992 = vadd.f32 %v895, %v947
      %v993 = vadd.f32 %v896, %v950
      %v994 = vadd.f32 %v897, %v953
      %v995 = vadd.f32 %v898, %v956
      %v996 = vadd.f32 %v899, %v959
      %v997 = vadd.f32 %v900, %v962
      %v998 = vadd.f32 %v901, %v965
      %v999 = vadd.f32 %v902, %v968
      %v1000 = vadd.f32 %v903, %v971
      %v1001 = vadd.f32 %v904, %v974
      %v1002 = vadd.f32 %v905, %v977
      %v1003 = vadd.f32 %v906, %v980
      %v1004 = vadd.f32 %v907, %v983
      %v1005 = vadd.f32 %v908, %v986
      %v1006 = vadd.f32 %v909, %v989
      %1007 = vst [vmem:[#allocation4] sm:$0xff] %v991
      %1008 = vst [vmem:[#allocation4 + $0x8] sm:$0xff] %v992
      %1009 = vst [vmem:[#allocation4 + $0x10] sm:$0xff] %v993
      %1010 = vst [vmem:[#allocation4 + $0x18] sm:$0xff] %v994
      %1011 = vst [vmem:[#allocation4 + $0x20] sm:$0xff] %v995
      %1012 = vst [vmem:[#allocation4 + $0x28] sm:$0xff] %v996
      %1013 = vst [vmem:[#allocation4 + $0x30] sm:$0xff] %v997
      %1014 = vst [vmem:[#allocation4 + $0x38] sm:$0xff] %v998
      %1015 = vst [vmem:[#allocation4 + $0x40] sm:$0xff] %v999
      %1016 = vst [vmem:[#allocation4 + $0x48] sm:$0xff] %v1000
      %1017 = vst [vmem:[#allocation4 + $0x50] sm:$0xff] %v1001
      %1018 = vst [vmem:[#allocation4 + $0x58] sm:$0xff] %v1002
      %1019 = vst [vmem:[#allocation4 + $0x60] sm:$0xff] %v1003
      %1020 = vst [vmem:[#allocation4 + $0x68] sm:$0xff] %v1004
      %1021 = vst [vmem:[#allocation4 + $0x70] sm:$0xff] %v1005
      %1022 = vst [vmem:[#allocation4 + $0x78] sm:$0xff] %v1006
      %1023 = vst.msk [vmem:[#allocation2] sm:$0xff] %vm781, %v509
      %1024 = vst.msk [vmem:[#allocation2 + $0x8] sm:$0xff] %vm781, %v510
      %1025 = vst.msk [vmem:[#allocation2 + $0x10] sm:$0xff] %vm781, %v511
      %1026 = vst.msk [vmem:[#allocation2 + $0x18] sm:$0xff] %vm781, %v512
      %1027 = vst.msk [vmem:[#allocation2 + $0x20] sm:$0xff] %vm781, %v513
      %1028 = vst.msk [vmem:[#allocation2 + $0x28] sm:$0xff] %vm781, %v514
      %1029 = vst.msk [vmem:[#allocation2 + $0x30] sm:$0xff] %vm781, %v515
      %1030 = vst.msk [vmem:[#allocation2 + $0x38] sm:$0xff] %vm781, %v516
      %1031 = vst.msk [vmem:[#allocation2 + $0x40] sm:$0xff] %vm781, %v517
      %1032 = vst.msk [vmem:[#allocation2 + $0x48] sm:$0xff] %vm781, %v518
      %1033 = vst.msk [vmem:[#allocation2 + $0x50] sm:$0xff] %vm781, %v519
      %1034 = vst.msk [vmem:[#allocation2 + $0x58] sm:$0xff] %vm781, %v520
      %1035 = vst.msk [vmem:[#allocation2 + $0x60] sm:$0xff] %vm781, %v521
      %1036 = vst.msk [vmem:[#allocation2 + $0x68] sm:$0xff] %vm781, %v522
      %1037 = vst.msk [vmem:[#allocation2 + $0x70] sm:$0xff] %vm781, %v523
      %1038 = vst.msk [vmem:[#allocation2 + $0x78] sm:$0xff] %vm781, %v524
      // Predicated region
      $region37: #{mh_attention.3} parent=31 // pred_check
        %p1039 = pneg %p289
      $region38: #{mh_attention.3} parent=31 // pred_check_branch
        %1041 = sbr.rel (%p1039) target = $region40
      $region39: #{mh_attention.3} parent=31 // pred_region
        %v1042 = vld [vmem:[#allocation4] sm:$0xff]
        %v1043 = vld [vmem:[#allocation4 + $0x8] sm:$0xff]
        %v1044 = vld [vmem:[#allocation4 + $0x10] sm:$0xff]
        %v1045 = vld [vmem:[#allocation4 + $0x18] sm:$0xff]
        %v1046 = vld [vmem:[#allocation4 + $0x20] sm:$0xff]
        %v1047 = vld [vmem:[#allocation4 + $0x28] sm:$0xff]
        %v1048 = vld [vmem:[#allocation4 + $0x30] sm:$0xff]
        %v1049 = vld [vmem:[#allocation4 + $0x38] sm:$0xff]
        %v1050 = vld [vmem:[#allocation4 + $0x40] sm:$0xff]
        %v1051 = vld [vmem:[#allocation4 + $0x48] sm:$0xff]
        %v1052 = vld [vmem:[#allocation4 + $0x50] sm:$0xff]
        %v1053 = vld [vmem:[#allocation4 + $0x58] sm:$0xff]
        %v1054 = vld [vmem:[#allocation4 + $0x60] sm:$0xff]
        %v1055 = vld [vmem:[#allocation4 + $0x68] sm:$0xff]
        %v1056 = vld [vmem:[#allocation4 + $0x70] sm:$0xff]
        %v1057 = vld [vmem:[#allocation4 + $0x78] sm:$0xff]
        %v1058 = vld [vmem:[#allocation3] sm:$0xff]
        %v1059 = vld [vmem:[#allocation3 + $0x8] sm:$0xff]
        %v1060 = vld [vmem:[#allocation3 + $0x10] sm:$0xff]
        %v1061 = vld [vmem:[#allocation3 + $0x18] sm:$0xff]
        %v1062 = vld [vmem:[#allocation3 + $0x20] sm:$0xff]
        %v1063 = vld [vmem:[#allocation3 + $0x28] sm:$0xff]
        %v1064 = vld [vmem:[#allocation3 + $0x30] sm:$0xff]
        %v1065 = vld [vmem:[#allocation3 + $0x38] sm:$0xff]
        %v1066 = vld [vmem:[#allocation3 + $0x40] sm:$0xff]
        %v1067 = vld [vmem:[#allocation3 + $0x48] sm:$0xff]
        %v1068 = vld [vmem:[#allocation3 + $0x50] sm:$0xff]
        %v1069 = vld [vmem:[#allocation3 + $0x58] sm:$0xff]
        %v1070 = vld [vmem:[#allocation3 + $0x60] sm:$0xff]
        %v1071 = vld [vmem:[#allocation3 + $0x68] sm:$0xff]
        %v1072 = vld [vmem:[#allocation3 + $0x70] sm:$0xff]
        %v1073 = vld [vmem:[#allocation3 + $0x78] sm:$0xff]
        %v1074 = vrcp.pop %v1058
        %v1075 = vrcp.pop %v1059
        %v1076 = vrcp.pop %v1060
        %v1077 = vrcp.pop %v1061
        %v1078 = vrcp.pop %v1062
        %v1079 = vrcp.pop %v1063
        %v1080 = vrcp.pop %v1064
        %v1081 = vrcp.pop %v1065
        %v1082 = vrcp.pop %v1066
        %v1083 = vrcp.pop %v1067
        %v1084 = vrcp.pop %v1068
        %v1085 = vrcp.pop %v1069
        %v1086 = vrcp.pop %v1070
        %v1087 = vrcp.pop %v1071
        %v1088 = vrcp.pop %v1072
        %v1089 = vrcp.pop %v1073
        %1091 = vset.pattern.permute.xlu0 0
        %1092 = vperm.xlu0 %1091, %v1074
        %v1093 = vpop.permute.xlu0 %1092
        %1096 = vset.pattern.permute.xlu0 0
        %1097 = vperm.xlu0 %1096, %v1075
        %v1098 = vpop.permute.xlu0 %1097
        %1101 = vset.pattern.permute.xlu0 0
        %1102 = vperm.xlu0 %1101, %v1076
        %v1103 = vpop.permute.xlu0 %1102
        %1106 = vset.pattern.permute.xlu0 0
        %1107 = vperm.xlu0 %1106, %v1077
        %v1108 = vpop.permute.xlu0 %1107
        %1111 = vset.pattern.permute.xlu0 0
        %1112 = vperm.xlu0 %1111, %v1078
        %v1113 = vpop.permute.xlu0 %1112
        %1116 = vset.pattern.permute.xlu0 0
        %1117 = vperm.xlu0 %1116, %v1079
        %v1118 = vpop.permute.xlu0 %1117
        %1121 = vset.pattern.permute.xlu0 0
        %1122 = vperm.xlu0 %1121, %v1080
        %v1123 = vpop.permute.xlu0 %1122
        %1126 = vset.pattern.permute.xlu0 0
        %1127 = vperm.xlu0 %1126, %v1081
        %v1128 = vpop.permute.xlu0 %1127
        %1131 = vset.pattern.permute.xlu0 0
        %1132 = vperm.xlu0 %1131, %v1082
        %v1133 = vpop.permute.xlu0 %1132
        %1136 = vset.pattern.permute.xlu0 0
        %1137 = vperm.xlu0 %1136, %v1083
        %v1138 = vpop.permute.xlu0 %1137
        %1141 = vset.pattern.permute.xlu0 0
        %1142 = vperm.xlu0 %1141, %v1084
        %v1143 = vpop.permute.xlu0 %1142
        %1146 = vset.pattern.permute.xlu0 0
        %1147 = vperm.xlu0 %1146, %v1085
        %v1148 = vpop.permute.xlu0 %1147
        %1151 = vset.pattern.permute.xlu0 0
        %1152 = vperm.xlu0 %1151, %v1086
        %v1153 = vpop.permute.xlu0 %1152
        %1156 = vset.pattern.permute.xlu0 0
        %1157 = vperm.xlu0 %1156, %v1087
        %v1158 = vpop.permute.xlu0 %1157
        %1161 = vset.pattern.permute.xlu0 0
        %1162 = vperm.xlu0 %1161, %v1088
        %v1163 = vpop.permute.xlu0 %1162
        %1166 = vset.pattern.permute.xlu0 0
        %1167 = vperm.xlu0 %1166, %v1089
        %v1168 = vpop.permute.xlu0 %1167
        %v1170 = vmul.f32 %v1042, %v1093
        %v1171 = vmul.f32 %v1043, %v1098
        %v1172 = vmul.f32 %v1044, %v1103
        %v1173 = vmul.f32 %v1045, %v1108
        %v1174 = vmul.f32 %v1046, %v1113
        %v1175 = vmul.f32 %v1047, %v1118
        %v1176 = vmul.f32 %v1048, %v1123
        %v1177 = vmul.f32 %v1049, %v1128
        %v1178 = vmul.f32 %v1050, %v1133
        %v1179 = vmul.f32 %v1051, %v1138
        %v1180 = vmul.f32 %v1052, %v1143
        %v1181 = vmul.f32 %v1053, %v1148
        %v1182 = vmul.f32 %v1054, %v1153
        %v1183 = vmul.f32 %v1055, %v1158
        %v1184 = vmul.f32 %v1056, %v1163
        %v1185 = vmul.f32 %v1057, %v1168
        %1186 = vst [vmem:[%s287] sm:$0xff] %v1170
        %1187 = vst [vmem:[%s287 + $0x8] sm:$0xff] %v1171
        %1188 = vst [vmem:[%s287 + $0x10] sm:$0xff] %v1172
        %1189 = vst [vmem:[%s287 + $0x18] sm:$0xff] %v1173
        %1190 = vst [vmem:[%s287 + $0x20] sm:$0xff] %v1174
        %1191 = vst [vmem:[%s287 + $0x28] sm:$0xff] %v1175
        %1192 = vst [vmem:[%s287 + $0x30] sm:$0xff] %v1176
        %1193 = vst [vmem:[%s287 + $0x38] sm:$0xff] %v1177
        %1194 = vst [vmem:[%s287 + $0x40] sm:$0xff] %v1178
        %1195 = vst [vmem:[%s287 + $0x48] sm:$0xff] %v1179
        %1196 = vst [vmem:[%s287 + $0x50] sm:$0xff] %v1180
        %1197 = vst [vmem:[%s287 + $0x58] sm:$0xff] %v1181
        %1198 = vst [vmem:[%s287 + $0x60] sm:$0xff] %v1182
        %1199 = vst [vmem:[%s287 + $0x68] sm:$0xff] %v1183
        %1200 = vst [vmem:[%s287 + $0x70] sm:$0xff] %v1184
        %1201 = vst [vmem:[%s287 + $0x78] sm:$0xff] %v1185
      $region40: #{mh_attention.3} parent=31 // pred_fallthru
        _
      %s1202 = smul.u32 16, %s20
      %p1203 = scmp.lt.s32.totalorder %s19, 1
      %s1204 = scalar_select %p1203, %s19, 1
      %p1205 = scmp.lt.s32.totalorder %s1202, 15
      %s1206 = scalar_select %p1205, %s1202, 15
      %s1207 = smul.addr %s1204, 16
      %s1208 = sadd.s32 %s1206, %s1207
      %s1209 = smul.addr %s1208, 8
      %s1210 = scalar_lea.vmem %s3, %s1209
      // Predicated region
      $region41: #{mh_attention.3} parent=31 // pred_check
        %p1211 = pneg %p137
      $region42: #{mh_attention.3} parent=31 // pred_check_branch
        %1213 = sbr.rel (%p1211) target = $region44
      $region43: #{mh_attention.3} parent=31 // pred_region
        %s1214 = smul.u32 16, %s20
      $region44: #{mh_attention.3} parent=31 // pred_fallthru
        _
    $region32: #{mh_attention.3} parent=5 // pred_fallthru
      _
    %p1215 = scmp.le.s32.totalorder 2, %s9
    // Predicated region
    $region45: #{mh_attention.3} parent=5 // pred_check
      %p1216 = pneg %p1215
    $region46: #{mh_attention.3} parent=5 // pred_check_branch
      %1218 = sbr.rel (%p1216) target = $region48
    $region47: #{mh_attention.3} parent=5 // pred_region
      %s1219 = ssub.s32 %s9, 2
      // Predicated region
      $region49: #{mh_attention.3} parent=47 // pred_check
        %p1220 = pneg %p143
      $region50: #{mh_attention.3} parent=47 // pred_check_branch
        %1222 = sbr.rel (%p1220) target = $region52
      $region51: #{mh_attention.3} parent=47 // pred_region
        %s1223 = smul.u32 16, %s23
        %p1224 = scmp.lt.s32.totalorder %s22, 1
        %s1225 = scalar_select %p1224, %s22, 1
        %p1226 = scmp.lt.s32.totalorder %s1223, 15
        %s1227 = scalar_select %p1226, %s1223, 15
        %s1228 = smul.addr %s1225, 16
        %s1229 = sadd.s32 %s1227, %s1228
        %s1230 = smul.addr %s1229, 8
        %s1231 = scalar_lea.vmem %s3, %s1230
      $region52: #{mh_attention.3} parent=47 // pred_fallthru
        _
    $region48: #{mh_attention.3} parent=5 // pred_fallthru
      _
  $region6: #{mh_attention.3} parent=0 // loop_footer
    %s13 = sadd.s32 1, %s9
  $region7: #{mh_attention.3} parent=0 // loop_footer_branch
    %8 = sbr.rel target = $region3
  $region8: #{mh_attention.3} parent=0 // loop_exit
    _

</llo_original>
